<compile_context>
chip_gen: v7x
topology: tpu7x:2x2x1
jax: 0.10.0
libtpu: 0.0.40
codegen_flags: <defaults>
</compile_context>

<pallas_src>
import jax
import jax.numpy as jnp
from jax.experimental import pallas as pl
from jax.experimental.pallas import tpu as pltpu

EPS = 1e-5      # nn.BatchNorm2d default eps
LANES = 128     # lane-dense channel padding


# --------------------------------------------------------------------------
# Pallas kernel 1: CoordAttention core (1x1 convs + BN + h_swish + sigmoids).
# --------------------------------------------------------------------------
def _coord_attn_kernel(xc_ref, w1_ref, g1_ref, bt1_ref,
                       w2_ref, b2_ref, w3_ref, b3_ref,
                       ah_ref, aw_ref):
    # xc: (M, Cin)  w1: (Cin, T)  g1/bt1: (1, T)
    # w2/w3: (T, Cout)  b2/b3: (1, Cout)  ah/aw: (M, Cout)
    m = xc_ref.shape[0]
    t = jnp.dot(xc_ref[...], w1_ref[...], preferred_element_type=jnp.float32)
    # conv1 bias is omitted: it is exactly cancelled by train-mode BN below.
    inv_m = 1.0 / m
    s = jnp.sum(t, axis=0, keepdims=True)
    sq = jnp.sum(t * t, axis=0, keepdims=True)
    mean = s * inv_m
    var = jnp.maximum(sq * inv_m - mean * mean, 0.0)
    scale = jax.lax.rsqrt(var + EPS) * g1_ref[...]
    shift = bt1_ref[...] - mean * scale
    tn = t * scale + shift
    act = tn * jnp.clip(tn + 3.0, 0.0, 6.0) * (1.0 / 6.0)      # h_swish
    zh = jnp.dot(act, w2_ref[...], preferred_element_type=jnp.float32) + b2_ref[...]
    zw = jnp.dot(act, w3_ref[...], preferred_element_type=jnp.float32) + b3_ref[...]
    ah_ref[...] = 1.0 / (1.0 + jnp.exp(-zh))                   # sigmoid
    aw_ref[...] = 1.0 / (1.0 + jnp.exp(-zw))


# --------------------------------------------------------------------------
# Pallas kernel 2: both (conv3x3 + BN + ReLU) branches + final fusion.
# grid=(2,): step 0 -> conv2(x) * attention, step 1 -> += conv3(up(y)).
# --------------------------------------------------------------------------
def _ff_fused_conv_kernel(p_ref, w_ref, g_ref, b_ref, att_ref, o_ref):
    # p: (P, K*Cin)   w: (K*Cin, 128)   g/b: (1, 128)   att/o: (P, 128)
    conv = jnp.dot(p_ref[...], w_ref[...], preferred_element_type=jnp.float32)
    inv_p = 1.0 / conv.shape[0]
    s = jnp.sum(conv, axis=0, keepdims=True)
    sq = jnp.sum(conv * conv, axis=0, keepdims=True)
    mean = s * inv_p
    var = jnp.maximum(sq * inv_p - mean * mean, 0.0)
    scale = jax.lax.rsqrt(var + EPS) * g_ref[...]       # gamma folded into scale
    shift = b_ref[...] - mean * scale
    act = jnp.maximum(conv * scale + shift, 0.0)        # BN + ReLU

    branch = pl.program_id(0)

    @pl.when(branch == 0)                               # conv2(x) * coord-attn
    def _():
        o_ref[...] = act * att_ref[...]

    @pl.when(branch == 1)                               # + conv3(upsample(y))
    def _():
        o_ref[...] = o_ref[...] + act


# --------------------------------------------------------------------------
# Plain-JAX glue helpers (data movement only).
# --------------------------------------------------------------------------
def _interp_matrix(out_size, in_size):
    """Row-stochastic (out, in) matrix for 1-D linear interp, align_corners=True."""
    if in_size == 1 or out_size == 1:
        return jnp.zeros((out_size, in_size), jnp.float32).at[:, 0].set(1.0)
    src = jnp.arange(out_size, dtype=jnp.float32) * ((in_size - 1) / (out_size - 1))
    i0 = jnp.clip(jnp.floor(src).astype(jnp.int32), 0, in_size - 2)
    frac = src - i0.astype(jnp.float32)
    rows = jnp.arange(out_size)
    m = jnp.zeros((out_size, in_size), jnp.float32)
    m = m.at[rows, i0].add(1.0 - frac)
    m = m.at[rows, i0 + 1].add(frac)
    return m


def _im2col_3x3_p1(x_nchw):
    """3x3 / stride 1 / pad 1 patches as one (N*H*W, 9*Cin) lane-dense slab."""
    n, c, h, w = x_nchw.shape
    xp = jnp.pad(jnp.transpose(x_nchw, (0, 2, 3, 1)),
                 ((0, 0), (1, 1), (1, 1), (0, 0)))
    cols = [xp[:, dy:dy + h, dx:dx + w, :] for dy in range(3) for dx in range(3)]
    return jnp.concatenate(cols, axis=-1).reshape(n * h * w, 9 * c)


def _conv_weight_to_mat(weight):
    """(Cout, Cin, KH, KW) -> (KH*KW*Cin, Cout), matching _im2col_3x3_p1 order."""
    cout, cin, kh, kw = weight.shape
    return jnp.transpose(weight, (2, 3, 1, 0)).reshape(kh * kw * cin, cout)


def _pad_lanes(a, lanes=LANES):
    pad = lanes - a.shape[-1]
    if pad <= 0:
        return a
    return jnp.pad(a, [(0, 0)] * (a.ndim - 1) + [(0, pad)])


# --------------------------------------------------------------------------
# FFModule.forward
# --------------------------------------------------------------------------
def ff_module_forward(x, y, params):
    n, c1, h, w = x.shape
    _, c2, h2, w2 = y.shape
    cout = params['conv2_w'].shape[0]
    # The fused conv path stacks both 3x3 convs on one grid axis and therefore
    # assumes in_ch1 == in_ch2 (true for the test config below).
    assert c1 == c2, "fused conv path assumes in_ch1 == in_ch2"
    p_total = n * h * w

    uh = _interp_matrix(h, h2)                  # bilinear (align_corners=True)
    uw = _interp_matrix(w, w2)

    # ---------------- CoordAttention(y): Pallas kernel ----------------
    pooled_h = jnp.transpose(jnp.mean(y, axis=3), (0, 2, 1))    # (N, H2, C)
    pooled_w = jnp.transpose(jnp.mean(y, axis=2), (0, 2, 1))    # (N, W2, C)
    xc = jnp.concatenate([pooled_h, pooled_w], axis=1)          # (N, H2+W2, C)
    m_rows = n * (h2 + w2)
    xc = xc.reshape(m_rows, c2).astype(jnp.float32)

    vmem = pl.BlockSpec(memory_space=pltpu.MemorySpace.VMEM)
    ah, aw = pl.pallas_call(
        _coord_attn_kernel,
        out_shape=(jax.ShapeDtypeStruct((m_rows, cout), jnp.float32),
                   jax.ShapeDtypeStruct((m_rows, cout), jnp.float32)),
        in_specs=[vmem] * 8,
        out_specs=(vmem, vmem),
    )(xc, params['ca_w1'], params['ca_bn_gamma'], params['ca_bn_beta'],
      params['ca_w2'], params['ca_b2'], params['ca_w3'], params['ca_b3'])

    out_h = ah.reshape(n, h2 + w2, cout)[:, :h2, :]   # sigmoid(conv2(x_h))
    out_w = aw.reshape(n, h2 + w2, cout)[:, h2:, :]   # sigmoid(conv3(x_w))

    # The attention map is rank-1 per (n, c); bilinear upsampling is separable
    # and linear, so upsample the 1-D factors and outer-product at full res.
    oh_up = jnp.einsum('ph,nhc->npc', uh, out_h)      # (N, H, Cout)
    ow_up = jnp.einsum('qw,nwc->nqc', uw, out_w)      # (N, W, Cout)
    att = oh_up[:, :, None, :] * ow_up[:, None, :, :] # (N, H, W, Cout)
    att = _pad_lanes(att.reshape(p_total, cout))      # (P, 128) lane-dense

    # ------------- both Conv2dBnRelu branches: one fused Pallas call -------------
    y_up = jnp.einsum('ph,nchw,qw->ncpq', uh, y, uw)  # bilinear upsample of y

    patches = jnp.stack([_im2col_3x3_p1(x), _im2col_3x3_p1(y_up)], axis=0)
    kc = patches.shape[-1]                            # 9 * Cin
    w_mats = jnp.stack([_pad_lanes(_conv_weight_to_mat(params['conv2_w'])),
                        _pad_lanes(_conv_weight_to_mat(params['conv3_w']))], axis=0)
    gammas = jnp.stack([_pad_lanes(params['conv2_gamma'][None, :]),
                        _pad_lanes(params['conv3_gamma'][None, :])], axis=0)
    betas = jnp.stack([_pad_lanes(params['conv2_beta'][None, :]),
                       _pad_lanes(params['conv3_beta'][None, :])], axis=0)

    flops = 2 * 2 * p_total * kc * LANES + 12 * p_total * LANES
    bytes_accessed = 4 * (patches.size + w_mats.size + gammas.size + betas.size
                          + att.size + p_total * LANES)

    out_flat = pl.pallas_call(
        _ff_fused_conv_kernel,
        out_shape=jax.ShapeDtypeStruct((p_total, LANES), jnp.float32),
        grid=(2,),
        in_specs=[
            pl.BlockSpec((None, p_total, kc), lambda i: (i, 0, 0)),   # im2col patches
            pl.BlockSpec((None, kc, LANES), lambda i: (i, 0, 0)),     # conv weights
            pl.BlockSpec((None, 1, LANES), lambda i: (i, 0, 0)),      # BN gamma
            pl.BlockSpec((None, 1, LANES), lambda i: (i, 0, 0)),      # BN beta
            pl.BlockSpec((p_total, LANES), lambda i: (0, 0)),         # attention map
        ],
        out_specs=pl.BlockSpec((p_total, LANES), lambda i: (0, 0)),   # resident accumulator
        compiler_params=pltpu.CompilerParams(
            dimension_semantics=("arbitrary",)),   # output block is revisited
        cost_estimate=pl.CostEstimate(flops=flops, transcendentals=0,
                                      bytes_accessed=bytes_accessed),
    )(patches.astype(jnp.float32), w_mats, gammas, betas, att)

    out = out_flat[:, :cout].reshape(n, h, w, cout)
    return jnp.transpose(out, (0, 3, 1, 2))           # back to NCHW


# --------------------------------------------------------------------------
# Pure-JAX reference (biases included; BN uses training-mode batch stats).
# --------------------------------------------------------------------------
def _reference_ff(x, y, params):
    def conv_bn_relu(inp, w, b, gamma, beta):
        conv = jax.lax.conv_general_dilated(
            inp, w, window_strides=(1, 1), padding=((1, 1), (1, 1)),
            dimension_numbers=("NCHW", "OIHW", "NCHW"))
        conv = conv + b.reshape(1, -1, 1, 1)
        mean = jnp.mean(conv, axis=(0, 2, 3), keepdims=True)
        var = jnp.mean((conv - mean) ** 2, axis=(0, 2, 3), keepdims=True)
        z = (conv - mean) * jax.lax.rsqrt(var + EPS)
        z = z * gamma.reshape(1, -1, 1, 1) + beta.reshape(1, -1, 1, 1)
        return jnp.maximum(z, 0.0)

    def coord_attention(inp):
        hh, ww = inp.shape[2], inp.shape[3]
        x_h = jnp.mean(inp, axis=3, keepdims=True)                          # (N,C,H,1)
        x_w = jnp.transpose(jnp.mean(inp, axis=2, keepdims=True), (0, 1, 3, 2))
        x_cat = jnp.concatenate([x_h, x_w], axis=2)                         # (N,C,H+W,1)
        t = jnp.einsum('ncij,ct->ntij', x_cat, params['ca_w1'])
        t = t + params['ca_conv1_b'].reshape(1, -1, 1, 1)
        mean = jnp.mean(t, axis=(0, 2, 3), keepdims=True)
        var = jnp.mean((t - mean) ** 2, axis=(0, 2, 3), keepdims=True)
        t = (t - mean) * jax.lax.rsqrt(var + EPS)
        t = (t * params['ca_bn_gamma'].reshape(1, -1, 1, 1)
             + params['ca_bn_beta'].reshape(1, -1, 1, 1))
        t = t * jnp.clip(t + 3.0, 0.0, 6.0) / 6.0                           # h_swish
        t_h, t_w = t[:, :, :hh, :], t[:, :, hh:, :]
        t_w = jnp.transpose(t_w, (0, 1, 3, 2))
        out_h = jax.nn.sigmoid(jnp.einsum('ntij,tc->ncij', t_h, params['ca_w2'])
                               + params['ca_b2'].reshape(1, -1, 1, 1))      # (N,Cout,H,1)
        out_w = jax.nn.sigmoid(jnp.einsum('ntij,tc->ncij', t_w, params['ca_w3'])
                               + params['ca_b3'].reshape(1, -1, 1, 1))      # (N,Cout,1,W)
        return out_w * out_h

    h, w = x.shape[2], x.shape[3]
    uh = _interp_matrix(h, y.shape[2])
    uw = _interp_matrix(w, y.shape[3])
    y_up = jnp.einsum('ph,nchw,qw->ncpq', uh, y, uw)
    y_up = conv_bn_relu(y_up, params['conv3_w'], params['conv3_b'],
                        params['conv3_gamma'], params['conv3_beta'])
    att = coord_attention(y)
    att_up = jnp.einsum('ph,nchw,qw->ncpq', uh, att, uw)
    x_c = conv_bn_relu(x, params['conv2_w'], params['conv2_b'],
                       params['conv2_gamma'], params['conv2_beta'])
    return y_up + x_c * att_up


if __name__ == "__main__":
    # FFModule(in_ch1=4, in_ch2=4, out_ch=8)
    # x: (2, 4, 16, 16) high-res feature;  y: (2, 4, 8, 8) low-res feature.
    N, C1, H, W = 2, 4, 16, 16
    C2, H2, W2 = 4, 8, 8
    COUT = 8
    TEMP_C = max(8, C2 // 32)          # CoordAttention hidden channels

    key = jax.random.PRNGKey(0)
    ks = jax.random.split(key, 20)
    rnd = lambda k, shape, s=0.1: s * jax.random.normal(k, shape, jnp.float32)

    x = jax.random.normal(ks[0], (N, C1, H, W), jnp.float32)
    y = jax.random.normal(ks[1], (N, C2, H2, W2), jnp.float32)

    params = {
        # conv2 = Conv2dBnRelu(in_ch1, out_ch, 3, 1, 1)   (applied to x)
        'conv2_w': rnd(ks[2], (COUT, C1, 3, 3)),
        'conv2_b': rnd(ks[3], (COUT,)),            # cancelled by train-mode BN
        'conv2_gamma': 1.0 + rnd(ks[4], (COUT,)),
        'conv2_beta': rnd(ks[5], (COUT,)),
        # conv3 = Conv2dBnRelu(in_ch2, out_ch, 3, 1, 1)   (applied to upsample(y))
        'conv3_w': rnd(ks[6], (COUT, C2, 3, 3)),
        'conv3_b': rnd(ks[7], (COUT,)),            # cancelled by train-mode BN
        'conv3_gamma': 1.0 + rnd(ks[8], (COUT,)),
        'conv3_beta': rnd(ks[9], (COUT,)),
        # CoordAttention(in_ch2, out_ch)
        'ca_w1': rnd(ks[10], (C2, TEMP_C)),        # conv1 1x1 weight, (Cin, temp_c)
        'ca_conv1_b': rnd(ks[11], (TEMP_C,)),      # cancelled by bn1 (reference only)
        'ca_bn_gamma': 1.0 + rnd(ks[12], (1, TEMP_C)),
        'ca_bn_beta': rnd(ks[13], (1, TEMP_C)),
        'ca_w2': rnd(ks[14], (TEMP_C, COUT)),      # conv2 1x1
        'ca_b2': rnd(ks[15], (1, COUT)),
        'ca_w3': rnd(ks[16], (TEMP_C, COUT)),      # conv3 1x1
        'ca_b3': rnd(ks[17], (1, COUT)),
    }

    out = jax.jit(ff_module_forward)(x, y, params)
    out = jax.block_until_ready(out)
    assert out.shape == (N, COUT, H, W), out.shape

    ref = jax.block_until_ready(jax.jit(_reference_ff)(x, y, params))
    max_err = float(jnp.max(jnp.abs(out - ref)))
    assert jnp.allclose(out, ref, atol=1e-3, rtol=1e-3), max_err

    print("KERNEL_OK")
</pallas_src>

<mosaic_0001>
module attributes {stable_mosaic.version = 11 : i64} {
  func.func private @main(%arg0: i32) attributes {dimension_semantics = [#tpu.dimension_semantics<core_parallel>], iteration_bounds = array<i64: 2>, tpu.core_type = #tpu.core_type<sc_scalar_subcore>, window_params = []} {
    return
  }
}

module attributes {stable_mosaic.version = 11 : i64} {
  func.func private @main(%arg0: i32) attributes {dimension_semantics = [#tpu.dimension_semantics<core_parallel>], iteration_bounds = array<i64: 2>, tpu.core_type = #tpu.core_type<sc_scalar_subcore>, window_params = []} {
    return
  }
}

module attributes {stable_mosaic.version = 11 : i64} {
  func.func @_coord_attn_kernel(%arg0: memref<32x4xf32, #tpu.memory_space<vmem>>, %arg1: memref<4x8xf32, #tpu.memory_space<vmem>>, %arg2: memref<1x8xf32, #tpu.memory_space<vmem>>, %arg3: memref<1x8xf32, #tpu.memory_space<vmem>>, %arg4: memref<8x8xf32, #tpu.memory_space<vmem>>, %arg5: memref<1x8xf32, #tpu.memory_space<vmem>>, %arg6: memref<8x8xf32, #tpu.memory_space<vmem>>, %arg7: memref<1x8xf32, #tpu.memory_space<vmem>>, %arg8: memref<32x8xf32, #tpu.memory_space<vmem>>, %arg9: memref<32x8xf32, #tpu.memory_space<vmem>>) attributes {dimension_semantics = [], scalar_prefetch = 0 : i64, scratch_operands = 0 : i64, tpu.core_type = #tpu.core_type<tc>} {
    %c0 = arith.constant 0 : index
    %c0_0 = arith.constant 0 : index
    %0 = vector.load %arg0[%c0, %c0_0] : memref<32x4xf32, #tpu.memory_space<vmem>>, vector<32x4xf32>
    %c0_1 = arith.constant 0 : index
    %c0_2 = arith.constant 0 : index
    %1 = vector.load %arg1[%c0_1, %c0_2] : memref<4x8xf32, #tpu.memory_space<vmem>>, vector<4x8xf32>
    %cst = arith.constant dense<0.000000e+00> : vector<32x8xf32>
    %2 = tpu.matmul %0, %1, %cst {dimension_numbers = #tpu.dot_dimension_numbers<[1], [0], [0], [1], [0, 0, 1, 1], [], []>} : vector<32x4xf32>, vector<4x8xf32>, vector<32x8xf32> -> vector<32x8xf32>
    %cst_3 = arith.constant dense<0.000000e+00> : vector<8xf32>
    %3 = vector.multi_reduction <add>, %2, %cst_3 [0] : vector<32x8xf32> to vector<8xf32>
    %4 = vector.shape_cast %3 : vector<8xf32> to vector<1x8xf32>
    %5 = arith.mulf %2, %2 : vector<32x8xf32>
    %cst_4 = arith.constant dense<0.000000e+00> : vector<8xf32>
    %6 = vector.multi_reduction <add>, %5, %cst_4 [0] : vector<32x8xf32> to vector<8xf32>
    %7 = vector.shape_cast %6 : vector<8xf32> to vector<1x8xf32>
    %cst_5 = arith.constant 3.125000e-02 : f32
    %8 = vector.broadcast %cst_5 : f32 to vector<1x8xf32>
    %9 = arith.mulf %4, %8 : vector<1x8xf32>
    %cst_6 = arith.constant 3.125000e-02 : f32
    %10 = vector.broadcast %cst_6 : f32 to vector<1x8xf32>
    %11 = arith.mulf %7, %10 : vector<1x8xf32>
    %12 = arith.mulf %9, %9 : vector<1x8xf32>
    %13 = arith.subf %11, %12 : vector<1x8xf32>
    %cst_7 = arith.constant 0.000000e+00 : f32
    %14 = vector.broadcast %cst_7 : f32 to vector<1x8xf32>
    %15 = arith.maximumf %13, %14 : vector<1x8xf32>
    %cst_8 = arith.constant 9.99999974E-6 : f32
    %16 = vector.broadcast %cst_8 : f32 to vector<1x8xf32>
    %17 = arith.addf %15, %16 : vector<1x8xf32>
    %18 = math.rsqrt %17 : vector<1x8xf32>
    %c0_9 = arith.constant 0 : index
    %c0_10 = arith.constant 0 : index
    %19 = vector.load %arg2[%c0_9, %c0_10] : memref<1x8xf32, #tpu.memory_space<vmem>>, vector<1x8xf32>
    %20 = arith.mulf %18, %19 : vector<1x8xf32>
    %c0_11 = arith.constant 0 : index
    %c0_12 = arith.constant 0 : index
    %21 = vector.load %arg3[%c0_11, %c0_12] : memref<1x8xf32, #tpu.memory_space<vmem>>, vector<1x8xf32>
    %22 = arith.mulf %9, %20 : vector<1x8xf32>
    %23 = arith.subf %21, %22 : vector<1x8xf32>
    %24 = vector.broadcast %20 : vector<1x8xf32> to vector<32x8xf32>
    %25 = arith.mulf %2, %24 : vector<32x8xf32>
    %26 = vector.broadcast %23 : vector<1x8xf32> to vector<32x8xf32>
    %27 = arith.addf %25, %26 : vector<32x8xf32>
    %cst_13 = arith.constant 3.000000e+00 : f32
    %28 = vector.broadcast %cst_13 : f32 to vector<32x8xf32>
    %29 = arith.addf %27, %28 : vector<32x8xf32>
    %cst_14 = arith.constant 0.000000e+00 : f32
    %cst_15 = arith.constant 6.000000e+00 : f32
    %30 = vector.broadcast %cst_14 : f32 to vector<32x8xf32>
    %31 = arith.maximumf %30, %29 : vector<32x8xf32>
    %32 = vector.broadcast %cst_15 : f32 to vector<32x8xf32>
    %33 = arith.minimumf %32, %31 : vector<32x8xf32>
    %34 = arith.mulf %27, %33 : vector<32x8xf32>
    %cst_16 = arith.constant 0.166666672 : f32
    %35 = vector.broadcast %cst_16 : f32 to vector<32x8xf32>
    %36 = arith.mulf %34, %35 : vector<32x8xf32>
    %c0_17 = arith.constant 0 : index
    %c0_18 = arith.constant 0 : index
    %37 = vector.load %arg4[%c0_17, %c0_18] : memref<8x8xf32, #tpu.memory_space<vmem>>, vector<8x8xf32>
    %cst_19 = arith.constant dense<0.000000e+00> : vector<32x8xf32>
    %38 = tpu.matmul %36, %37, %cst_19 {dimension_numbers = #tpu.dot_dimension_numbers<[1], [0], [0], [1], [0, 0, 1, 1], [], []>} : vector<32x8xf32>, vector<8x8xf32>, vector<32x8xf32> -> vector<32x8xf32>
    %c0_20 = arith.constant 0 : index
    %c0_21 = arith.constant 0 : index
    %39 = vector.load %arg5[%c0_20, %c0_21] : memref<1x8xf32, #tpu.memory_space<vmem>>, vector<1x8xf32>
    %40 = vector.broadcast %39 : vector<1x8xf32> to vector<32x8xf32>
    %41 = arith.addf %38, %40 : vector<32x8xf32>
    %c0_22 = arith.constant 0 : index
    %c0_23 = arith.constant 0 : index
    %42 = vector.load %arg6[%c0_22, %c0_23] : memref<8x8xf32, #tpu.memory_space<vmem>>, vector<8x8xf32>
    %cst_24 = arith.constant dense<0.000000e+00> : vector<32x8xf32>
    %43 = tpu.matmul %36, %42, %cst_24 {dimension_numbers = #tpu.dot_dimension_numbers<[1], [0], [0], [1], [0, 0, 1, 1], [], []>} : vector<32x8xf32>, vector<8x8xf32>, vector<32x8xf32> -> vector<32x8xf32>
    %c0_25 = arith.constant 0 : index
    %c0_26 = arith.constant 0 : index
    %44 = vector.load %arg7[%c0_25, %c0_26] : memref<1x8xf32, #tpu.memory_space<vmem>>, vector<1x8xf32>
    %45 = vector.broadcast %44 : vector<1x8xf32> to vector<32x8xf32>
    %46 = arith.addf %43, %45 : vector<32x8xf32>
    %cst_27 = arith.constant 0.000000e+00 : f32
    %47 = vector.broadcast %cst_27 : f32 to vector<32x8xf32>
    %48 = arith.subf %47, %41 : vector<32x8xf32>
    %49 = math.exp %48 : vector<32x8xf32>
    %cst_28 = arith.constant 1.000000e+00 : f32
    %50 = vector.broadcast %cst_28 : f32 to vector<32x8xf32>
    %51 = arith.addf %50, %49 : vector<32x8xf32>
    %cst_29 = arith.constant 1.000000e+00 : f32
    %52 = vector.broadcast %cst_29 : f32 to vector<32x8xf32>
    %53 = arith.divf %52, %51 : vector<32x8xf32>
    %c0_30 = arith.constant 0 : index
    %c0_31 = arith.constant 0 : index
    %54 = vector.load %arg8[%c0_30, %c0_31] : memref<32x8xf32, #tpu.memory_space<vmem>>, vector<32x8xf32>
    tpu.vector_store %arg8[%c0_30, %c0_31], %53 {strides = array<i32>} : memref<32x8xf32, #tpu.memory_space<vmem>>, vector<32x8xf32>,
    %cst_32 = arith.constant 0.000000e+00 : f32
    %55 = vector.broadcast %cst_32 : f32 to vector<32x8xf32>
    %56 = arith.subf %55, %46 : vector<32x8xf32>
    %57 = math.exp %56 : vector<32x8xf32>
    %cst_33 = arith.constant 1.000000e+00 : f32
    %58 = vector.broadcast %cst_33 : f32 to vector<32x8xf32>
    %59 = arith.addf %58, %57 : vector<32x8xf32>
    %cst_34 = arith.constant 1.000000e+00 : f32
    %60 = vector.broadcast %cst_34 : f32 to vector<32x8xf32>
    %61 = arith.divf %60, %59 : vector<32x8xf32>
    %c0_35 = arith.constant 0 : index
    %c0_36 = arith.constant 0 : index
    %62 = vector.load %arg9[%c0_35, %c0_36] : memref<32x8xf32, #tpu.memory_space<vmem>>, vector<32x8xf32>
    tpu.vector_store %arg9[%c0_35, %c0_36], %61 {strides = array<i32>} : memref<32x8xf32, #tpu.memory_space<vmem>>, vector<32x8xf32>,
    return
  }
}

module attributes {stable_mosaic.version = 11 : i64} {
  func.func @_ff_fused_conv_kernel(%arg0: i32, %arg1: memref<1x512x36xf32, #tpu.memory_space<vmem>>, %arg2: memref<1x36x128xf32, #tpu.memory_space<vmem>>, %arg3: memref<1x1x128xf32, #tpu.memory_space<vmem>>, %arg4: memref<1x1x128xf32, #tpu.memory_space<vmem>>, %arg5: memref<512x128xf32, #tpu.memory_space<vmem>>, %arg6: memref<512x128xf32, #tpu.memory_space<vmem>>) attributes {dimension_semantics = [#tpu.dimension_semantics<arbitrary>], iteration_bounds = array<i64: 2>, scalar_prefetch = 0 : i64, scratch_operands = 0 : i64, tpu.core_type = #tpu.core_type<tc>, window_params = [{transform_indices = @transform_0, window_bounds = array<i64: 1, 512, 36>}, {transform_indices = @transform_1, window_bounds = array<i64: 1, 36, 128>}, {transform_indices = @transform_2, window_bounds = array<i64: 1, 1, 128>}, {transform_indices = @transform_3, window_bounds = array<i64: 1, 1, 128>}, {pipeline_mode = #tpu.pipeline_mode<synchronous>, transform_indices = @transform_4, window_bounds = array<i64: 512, 128>}, {pipeline_mode = #tpu.pipeline_mode<synchronous>, transform_indices = @transform_5, window_bounds = array<i64: 512, 128>}]} {
    %c0 = arith.constant 0 : index
    %c0_0 = arith.constant 0 : index
    %c0_1 = arith.constant 0 : index
    %0 = vector.load %arg1[%c0, %c0_0, %c0_1] : memref<1x512x36xf32, #tpu.memory_space<vmem>>, vector<1x512x36xf32>
    %1 = vector.shape_cast %0 : vector<1x512x36xf32> to vector<512x36xf32>
    %c0_2 = arith.constant 0 : index
    %c0_3 = arith.constant 0 : index
    %c0_4 = arith.constant 0 : index
    %2 = vector.load %arg2[%c0_2, %c0_3, %c0_4] : memref<1x36x128xf32, #tpu.memory_space<vmem>>, vector<1x36x128xf32>
    %3 = vector.shape_cast %2 : vector<1x36x128xf32> to vector<36x128xf32>
    %cst = arith.constant dense<0.000000e+00> : vector<512x128xf32>
    %4 = tpu.matmul %1, %3, %cst {dimension_numbers = #tpu.dot_dimension_numbers<[1], [0], [0], [1], [0, 0, 1, 1], [], []>} : vector<512x36xf32>, vector<36x128xf32>, vector<512x128xf32> -> vector<512x128xf32>
    %cst_5 = arith.constant dense<0.000000e+00> : vector<128xf32>
    %5 = vector.multi_reduction <add>, %4, %cst_5 [0] : vector<512x128xf32> to vector<128xf32>
    %6 = vector.shape_cast %5 : vector<128xf32> to vector<1x128xf32>
    %7 = arith.mulf %4, %4 : vector<512x128xf32>
    %cst_6 = arith.constant dense<0.000000e+00> : vector<128xf32>
    %8 = vector.multi_reduction <add>, %7, %cst_6 [0] : vector<512x128xf32> to vector<128xf32>
    %9 = vector.shape_cast %8 : vector<128xf32> to vector<1x128xf32>
    %cst_7 = arith.constant 0.001953125 : f32
    %10 = vector.broadcast %cst_7 : f32 to vector<1x128xf32>
    %11 = arith.mulf %6, %10 : vector<1x128xf32>
    %cst_8 = arith.constant 0.001953125 : f32
    %12 = vector.broadcast %cst_8 : f32 to vector<1x128xf32>
    %13 = arith.mulf %9, %12 : vector<1x128xf32>
    %14 = arith.mulf %11, %11 : vector<1x128xf32>
    %15 = arith.subf %13, %14 : vector<1x128xf32>
    %cst_9 = arith.constant 0.000000e+00 : f32
    %16 = vector.broadcast %cst_9 : f32 to vector<1x128xf32>
    %17 = arith.maximumf %15, %16 : vector<1x128xf32>
    %cst_10 = arith.constant 9.99999974E-6 : f32
    %18 = vector.broadcast %cst_10 : f32 to vector<1x128xf32>
    %19 = arith.addf %17, %18 : vector<1x128xf32>
    %20 = math.rsqrt %19 : vector<1x128xf32>
    %c0_11 = arith.constant 0 : index
    %c0_12 = arith.constant 0 : index
    %c0_13 = arith.constant 0 : index
    %21 = vector.load %arg3[%c0_11, %c0_12, %c0_13] : memref<1x1x128xf32, #tpu.memory_space<vmem>>, vector<1x1x128xf32>
    %22 = vector.shape_cast %21 : vector<1x1x128xf32> to vector<1x128xf32>
    %23 = arith.mulf %20, %22 : vector<1x128xf32>
    %c0_14 = arith.constant 0 : index
    %c0_15 = arith.constant 0 : index
    %c0_16 = arith.constant 0 : index
    %24 = vector.load %arg4[%c0_14, %c0_15, %c0_16] : memref<1x1x128xf32, #tpu.memory_space<vmem>>, vector<1x1x128xf32>
    %25 = vector.shape_cast %24 : vector<1x1x128xf32> to vector<1x128xf32>
    %26 = arith.mulf %11, %23 : vector<1x128xf32>
    %27 = arith.subf %25, %26 : vector<1x128xf32>
    %28 = vector.broadcast %23 : vector<1x128xf32> to vector<512x128xf32>
    %29 = arith.mulf %4, %28 : vector<512x128xf32>
    %30 = vector.broadcast %27 : vector<1x128xf32> to vector<512x128xf32>
    %31 = arith.addf %29, %30 : vector<512x128xf32>
    %cst_17 = arith.constant 0.000000e+00 : f32
    %32 = vector.broadcast %cst_17 : f32 to vector<512x128xf32>
    %33 = arith.maximumf %31, %32 : vector<512x128xf32>
    %c0_i32 = arith.constant 0 : i32
    %34 = arith.cmpi eq, %arg0, %c0_i32 : i32
    %35 = arith.extui %34 : i1 to i32
    %c0_i32_18 = arith.constant 0 : i32
    %36 = arith.cmpi ne, %35, %c0_i32_18 : i32
    scf.if %36 {
      %c0_20 = arith.constant 0 : index
      %c0_21 = arith.constant 0 : index
      %40 = vector.load %arg5[%c0_20, %c0_21] : memref<512x128xf32, #tpu.memory_space<vmem>>, vector<512x128xf32>
      %41 = arith.mulf %33, %40 : vector<512x128xf32>
      %c0_22 = arith.constant 0 : index
      %c0_23 = arith.constant 0 : index
      %42 = vector.load %arg6[%c0_22, %c0_23] : memref<512x128xf32, #tpu.memory_space<vmem>>, vector<512x128xf32>
      tpu.vector_store %arg6[%c0_22, %c0_23], %41 {strides = array<i32>} : memref<512x128xf32, #tpu.memory_space<vmem>>, vector<512x128xf32>,
    } else {
    }
    %c1_i32 = arith.constant 1 : i32
    %37 = arith.cmpi eq, %arg0, %c1_i32 : i32
    %38 = arith.extui %37 : i1 to i32
    %c0_i32_19 = arith.constant 0 : i32
    %39 = arith.cmpi ne, %38, %c0_i32_19 : i32
    scf.if %39 {
      %c0_20 = arith.constant 0 : index
      %c0_21 = arith.constant 0 : index
      %40 = vector.load %arg6[%c0_20, %c0_21] : memref<512x128xf32, #tpu.memory_space<vmem>>, vector<512x128xf32>
      %41 = arith.addf %40, %33 : vector<512x128xf32>
      %c0_22 = arith.constant 0 : index
      %c0_23 = arith.constant 0 : index
      %42 = vector.load %arg6[%c0_22, %c0_23] : memref<512x128xf32, #tpu.memory_space<vmem>>, vector<512x128xf32>
      tpu.vector_store %arg6[%c0_22, %c0_23], %41 {strides = array<i32>} : memref<512x128xf32, #tpu.memory_space<vmem>>, vector<512x128xf32>,
    } else {
    }
    return
  }
  func.func @transform_0(%arg0: i32) -> (i32, i32, i32) {
    %c0_i32 = arith.constant 0 : i32
    %c0_i32_0 = arith.constant 0 : i32
    %c0_i32_1 = arith.constant 0 : i32
    return %arg0, %c0_i32, %c0_i32_0 : i32, i32, i32
  }
  func.func @transform_1(%arg0: i32) -> (i32, i32, i32) {
    %c0_i32 = arith.constant 0 : i32
    %c0_i32_0 = arith.constant 0 : i32
    %c0_i32_1 = arith.constant 0 : i32
    return %arg0, %c0_i32, %c0_i32_0 : i32, i32, i32
  }
  func.func @transform_2(%arg0: i32) -> (i32, i32, i32) {
    %c0_i32 = arith.constant 0 : i32
    %c0_i32_0 = arith.constant 0 : i32
    %c0_i32_1 = arith.constant 0 : i32
    return %arg0, %c0_i32, %c0_i32_0 : i32, i32, i32
  }
  func.func @transform_3(%arg0: i32) -> (i32, i32, i32) {
    %c0_i32 = arith.constant 0 : i32
    %c0_i32_0 = arith.constant 0 : i32
    %c0_i32_1 = arith.constant 0 : i32
    return %arg0, %c0_i32, %c0_i32_0 : i32, i32, i32
  }
  func.func @transform_4(%arg0: i32) -> (i32, i32) {
    %c0_i32 = arith.constant 0 : i32
    %c0_i32_0 = arith.constant 0 : i32
    %c0_i32_1 = arith.constant 0 : i32
    return %c0_i32, %c0_i32_0 : i32, i32
  }
  func.func @transform_5(%arg0: i32) -> (i32, i32) {
    %c0_i32 = arith.constant 0 : i32
    %c0_i32_0 = arith.constant 0 : i32
    %c0_i32_1 = arith.constant 0 : i32
    return %c0_i32, %c0_i32_0 : i32, i32
  }
}

</mosaic_0001>

<llo_original>
// kernel: ff_module_forward.2
$region0: #{ff_module_forward.2}
  #allocation0 [shape = 'u32[]', space=smem, size = 0x4, offset = 0x4, fixed_abs, tag = 'smem constant byte address 0x4 - core index']
  #allocation1 [shape = 'u32[144,128]{1,0:T(1,128)}', space=vmem, size = 0x12000, scoped, tag = 'internal scratch']
  %s0 = inlined_call_operand.vmem [shape: f32[32,4], index: 0, kind: input, shape index: {}]
  %s1 = inlined_call_operand.vmem [shape: f32[4,8], index: 1, kind: input, shape index: {}]
  %s2 = inlined_call_operand.vmem [shape: f32[1,8], index: 2, kind: input, shape index: {}]
  %s3 = inlined_call_operand.vmem [shape: f32[1,8], index: 3, kind: input, shape index: {}]
  %s4 = inlined_call_operand.vmem [shape: f32[8,8], index: 4, kind: input, shape index: {}]
  %s5 = inlined_call_operand.vmem [shape: f32[1,8], index: 5, kind: input, shape index: {}]
  %s6 = inlined_call_operand.vmem [shape: f32[8,8], index: 6, kind: input, shape index: {}]
  %s7 = inlined_call_operand.vmem [shape: f32[1,8], index: 7, kind: input, shape index: {}]
  %s8 = inlined_call_operand.vmem [shape: f32[32,8], index: 8, kind: output, shape index: {0}]
  %s9 = inlined_call_operand.vmem [shape: f32[32,8], index: 9, kind: output, shape index: {1}]
  %10 = xla_tuple %s8, %s9
  %s11 = sld [smem:[#allocation0]]
  $region50: #{ff_module_forward.2} parent=0
    _
  %s13 = ssub.s32 1, %s11
  %s14 = scalar_select 0, %s13, %s11
  // Predicated region
  $region2: #{ff_module_forward.2} parent=0 // pred_check
    _
  $region3: #{ff_module_forward.2} parent=0 // pred_check_branch
    %16 = sbr.rel (0) target = $region5
  $region4: #{ff_module_forward.2} parent=0 // pred_region
    _
  $region5: #{ff_module_forward.2} parent=0 // pred_fallthru
    _
  // Predicated region
  $region6: #{ff_module_forward.2} parent=0 // pred_check
    _
  $region7: #{ff_module_forward.2} parent=0 // pred_check_branch
    %18 = sbr.rel (0) target = $region9
  $region8: #{ff_module_forward.2} parent=0 // pred_region
    _
  $region9: #{ff_module_forward.2} parent=0 // pred_fallthru
    _
  // Predicated region
  $region10: #{ff_module_forward.2} parent=0 // pred_check
    _
  $region11: #{ff_module_forward.2} parent=0 // pred_check_branch
    %20 = sbr.rel (0) target = $region13
  $region12: #{ff_module_forward.2} parent=0 // pred_region
    _
  $region13: #{ff_module_forward.2} parent=0 // pred_fallthru
    _
  // Predicated region
  $region14: #{ff_module_forward.2} parent=0 // pred_check
    _
  $region15: #{ff_module_forward.2} parent=0 // pred_check_branch
    %22 = sbr.rel (0) target = $region17
  $region16: #{ff_module_forward.2} parent=0 // pred_region
    _
  $region17: #{ff_module_forward.2} parent=0 // pred_fallthru
    _
  // Predicated region
  $region18: #{ff_module_forward.2} parent=0 // pred_check
    _
  $region19: #{ff_module_forward.2} parent=0 // pred_check_branch
    %24 = sbr.rel (0) target = $region21
  $region20: #{ff_module_forward.2} parent=0 // pred_region
    _
  $region21: #{ff_module_forward.2} parent=0 // pred_fallthru
    _
  // Predicated region
  $region22: #{ff_module_forward.2} parent=0 // pred_check
    _
  $region23: #{ff_module_forward.2} parent=0 // pred_check_branch
    %26 = sbr.rel (0) target = $region25
  $region24: #{ff_module_forward.2} parent=0 // pred_region
    _
  $region25: #{ff_module_forward.2} parent=0 // pred_fallthru
    _
  // Predicated region
  $region26: #{ff_module_forward.2} parent=0 // pred_check
    _
  $region27: #{ff_module_forward.2} parent=0 // pred_check_branch
    %28 = sbr.rel (0) target = $region29
  $region28: #{ff_module_forward.2} parent=0 // pred_region
    _
  $region29: #{ff_module_forward.2} parent=0 // pred_fallthru
    _
  // Predicated region
  $region30: #{ff_module_forward.2} parent=0 // pred_check
    _
  $region31: #{ff_module_forward.2} parent=0 // pred_check_branch
    %30 = sbr.rel (0) target = $region33
  $region32: #{ff_module_forward.2} parent=0 // pred_region
    _
  $region33: #{ff_module_forward.2} parent=0 // pred_fallthru
    _
  %v31 = vld [vmem:[%s0] sm:$0xff]
  %v32 = vld [vmem:[%s0 + $0x8] sm:$0xff]
  %v33 = vld [vmem:[%s0 + $0x10] sm:$0xff]
  %v34 = vld [vmem:[%s0 + $0x18] sm:$0xff]
  %v35 = vld [vmem:[%s1] sm:$0xf]
  %vm36 = vcmask 31744
  %v38 = vsel %vm36, %v31, 0
  %v41 = vsel %vm36, %v32, 0
  %v44 = vsel %vm36, %v33, 0
  %v47 = vsel %vm36, %v34, 0
  %vm49 = vcmask 1043456
  %v51 = vsel %vm49, %v35, 0
  %53 = vmatprep.subr.mxu0 0.0
  %54 = vmatpush1.msra.mxu0 %v51
  %55 = vmatprep.subr.mxu0 0.0
  %56 = vmatpush1.msra.mxu0 0.0
  %57 = vmatprep.subr.mxu0 0.0
  %58 = vmatpush1.msra.mxu0 0.0
  %59 = vmatprep.subr.mxu0 0.0
  %60 = vmatpush1.msra.mxu0 0.0
  %61 = vmatprep.subr.mxu0 0.0
  %62 = vmatpush1.msra.mxu0 0.0
  %63 = vmatprep.subr.mxu0 0.0
  %64 = vmatpush1.msra.mxu0 0.0
  %65 = vmatprep.subr.mxu0 0.0
  %66 = vmatpush1.msra.mxu0 0.0
  %67 = vmatprep.subr.mxu0 0.0
  %68 = vmatpush1.msra.mxu0 0.0
  %69 = vmatprep.subr.mxu0 0.0
  %70 = vmatpush1.msra.mxu0 0.0
  %71 = vmatprep.subr.mxu0 0.0
  %72 = vmatpush1.msra.mxu0 0.0
  %73 = vmatprep.subr.mxu0 0.0
  %74 = vmatpush1.msra.mxu0 0.0
  %75 = vmatprep.subr.mxu0 0.0
  %76 = vmatpush1.msra.mxu0 0.0
  %77 = vmatprep.subr.mxu0 0.0
  %78 = vmatpush1.msra.mxu0 0.0
  %79 = vmatprep.subr.mxu0 0.0
  %80 = vmatpush1.msra.mxu0 0.0
  %81 = vmatprep.subr.mxu0 0.0
  %82 = vmatpush1.msra.mxu0 0.0
  %83 = vmatprep.subr.mxu0 0.0
  %84 = vmatpush1.msra.mxu0 0.0
  %85 = vmatprep.subr.mxu0 0.0
  %86 = vmatpush1.msra.mxu0 0.0
  %87 = vmatprep.subr.mxu0 0.0
  %88 = vmatpush1.msra.mxu0 0.0
  %89 = vmatprep.subr.mxu0 0.0
  %90 = vmatpush1.msra.mxu0 0.0
  %91 = vmatprep.subr.mxu0 0.0
  %92 = vmatpush1.msra.mxu0 0.0
  %93 = vmatprep.subr.mxu0 0.0
  %94 = vmatpush1.msra.mxu0 0.0
  %95 = vmatprep.subr.mxu0 0.0
  %96 = vmatpush1.msra.mxu0 0.0
  %97 = vmatprep.subr.mxu0 0.0
  %98 = vmatpush1.msra.mxu0 0.0
  %99 = vmatprep.subr.mxu0 0.0
  %100 = vmatpush1.msra.mxu0 0.0
  %101 = vmatprep.subr.mxu0 0.0
  %102 = vmatpush1.msra.mxu0 0.0
  %103 = vmatprep.subr.mxu0 0.0
  %104 = vmatpush1.msra.mxu0 0.0
  %105 = vmatprep.subr.mxu0 0.0
  %106 = vmatpush1.msra.mxu0 0.0
  %107 = vmatprep.subr.mxu0 0.0
  %108 = vmatpush1.msra.mxu0 0.0
  %109 = vmatprep.subr.mxu0 0.0
  %110 = vmatpush1.msra.mxu0 0.0
  %111 = vmatprep.subr.mxu0 0.0
  %112 = vmatpush1.msra.mxu0 0.0
  %113 = vmatprep.subr.mxu0 0.0
  %114 = vmatpush1.msra.mxu0 0.0
  %115 = vmatprep.subr.mxu0 0.0
  %116 = vmatpush1.msra.mxu0 0.0
  %117 = vmatprep.mubr.f32.mxu0 0.0
  %118 = vmatmul.mubr.f32.gmra.mrb[0].mxu0 %v38
  %v119 = vpop.f32.mrb[0].mxu0
  %v120 = vadd.f32 0.0, %v119
  %v121 = vpop.f32.mrb[0].mxu0
  %122 = vmatprep.mubr.f32.mxu0 0.0
  %123 = vmatmul.mubr.f32.gmra.mrb[0].mxu0 %v41
  %v124 = vpop.f32.mrb[0].mxu0
  %v125 = vadd.f32 0.0, %v124
  %v126 = vpop.f32.mrb[0].mxu0
  %127 = vmatprep.mubr.f32.mxu0 0.0
  %128 = vmatmul.mubr.f32.gmra.mrb[0].mxu0 %v44
  %v129 = vpop.f32.mrb[0].mxu0
  %v130 = vadd.f32 0.0, %v129
  %v131 = vpop.f32.mrb[0].mxu0
  %132 = vmatprep.mubr.f32.mxu0 0.0
  %133 = vmatmul.mubr.f32.gmra.mrb[0].mxu0 %v47
  %v134 = vpop.f32.mrb[0].mxu0
  %v135 = vadd.f32 0.0, %v134
  %v136 = vpop.f32.mrb[0].mxu0
  %137 = vdwg.mxu0
  %vm138 = vcmask 64512
  %v139 = vsel %vm138, %v120, 0.0
  %v140 = vsel %vm138, %v125, 0.0
  %v141 = vadd.f32 %v139, %v140
  %v142 = vsel %vm138, %v130, 0.0
  %v143 = vadd.f32 %v141, %v142
  %v144 = vsel %vm138, %v135, 0.0
  %v145 = vadd.f32 %v143, %v144
  %v146 = vrot.slane %v145, 4
  %v147 = vadd.f32 %v145, %v146
  %v148 = vrot.slane %v147, 2
  %v149 = vadd.f32 %v147, %v148
  %v150 = vrot.slane %v149, 1
  %v151 = vadd.f32 %v149, %v150
  %v152 = vmul.f32 %v120, %v120
  %v153 = vmul.f32 %v125, %v125
  %v154 = vmul.f32 %v130, %v130
  %v155 = vmul.f32 %v135, %v135
  %v156 = vsel %vm138, %v152, 0.0
  %v157 = vsel %vm138, %v153, 0.0
  %v158 = vadd.f32 %v156, %v157
  %v159 = vsel %vm138, %v154, 0.0
  %v160 = vadd.f32 %v158, %v159
  %v161 = vsel %vm138, %v155, 0.0
  %v162 = vadd.f32 %v160, %v161
  %v163 = vrot.slane %v162, 4
  %v164 = vadd.f32 %v162, %v163
  %v165 = vrot.slane %v164, 2
  %v166 = vadd.f32 %v164, %v165
  %v167 = vrot.slane %v166, 1
  %v168 = vadd.f32 %v166, %v167
  %v169 = vmul.f32 %v151, 0.03125
  %v170 = vmul.f32 %v168, 0.03125
  %v171 = vmul.f32 %v169, %v169
  %v172 = vsub.f32 %v170, %v171
  %v173 = vmax.f32 %v172, 0.0
  %v174 = vadd.f32 %v173, 1e-05
  %v175 = vrsqrt.pop %v174
  %v176 = vld [vmem:[%s2] sm:$0x1]
  %v177 = vmul.f32 %v175, %v176
  %v178 = vld [vmem:[%s3] sm:$0x1]
  %v179 = vmul.f32 %v169, %v177
  %v180 = vsub.f32 %v178, %v179
  %v181 = vlaneseq
  %v182 = vshrl.u32 %v181, 7
  %v183 = vsub.s32 0, %v182
  %v184 = vrot.slane %v177, %v183
  %v185 = vmul.f32 %v120, %v184
  %v186 = vmul.f32 %v125, %v184
  %v187 = vmul.f32 %v130, %v184
  %v188 = vmul.f32 %v135, %v184
  %v190 = vlaneseq
  %v191 = vshrl.u32 %v190, 7
  %v192 = vsub.s32 0, %v191
  %v193 = vrot.slane %v180, %v192
  %v195 = vadd.f32 %v185, %v193
  %v196 = vadd.f32 %v186, %v193
  %v197 = vadd.f32 %v187, %v193
  %v198 = vadd.f32 %v188, %v193
  %v199 = vadd.f32 %v195, 3.0
  %v200 = vadd.f32 %v196, 3.0
  %v201 = vadd.f32 %v197, 3.0
  %v202 = vadd.f32 %v198, 3.0
  %v203 = vmax.f32 %v199, 0.0
  %v204 = vmax.f32 %v200, 0.0
  %v205 = vmax.f32 %v201, 0.0
  %v206 = vmax.f32 %v202, 0.0
  %v207 = vmin.f32 %v203, 6.0
  %v208 = vmin.f32 %v204, 6.0
  %v209 = vmin.f32 %v205, 6.0
  %v210 = vmin.f32 %v206, 6.0
  %v211 = vmul.f32 %v195, %v207
  %v212 = vmul.f32 %v196, %v208
  %v213 = vmul.f32 %v197, %v209
  %v214 = vmul.f32 %v198, %v210
  %v215 = vmul.f32 %v211, 0.16666667
  %v216 = vmul.f32 %v212, 0.16666667
  %v217 = vmul.f32 %v213, 0.16666667
  %v218 = vmul.f32 %v214, 0.16666667
  %v219 = vld [vmem:[%s4] sm:$0xff]
  %v220 = vld [vmem:[%s5] sm:$0x1]
  %v222 = vlaneseq
  %v223 = vshrl.u32 %v222, 7
  %v224 = vsub.s32 0, %v223
  %v225 = vrot.slane %v220, %v224
  %v228 = vsel %vm138, %v215, 0
  %v231 = vsel %vm138, %v216, 0
  %v234 = vsel %vm138, %v217, 0
  %v237 = vsel %vm138, %v218, 0
  %239 = vmatprep.subr.mxu0 0.0
  %240 = vmatpush1.msra.mxu0 %v219
  %241 = vmatprep.subr.mxu0 0.0
  %242 = vmatpush1.msra.mxu0 0.0
  %243 = vmatprep.subr.mxu0 0.0
  %244 = vmatpush1.msra.mxu0 0.0
  %245 = vmatprep.subr.mxu0 0.0
  %246 = vmatpush1.msra.mxu0 0.0
  %247 = vmatprep.subr.mxu0 0.0
  %248 = vmatpush1.msra.mxu0 0.0
  %249 = vmatprep.subr.mxu0 0.0
  %250 = vmatpush1.msra.mxu0 0.0
  %251 = vmatprep.subr.mxu0 0.0
  %252 = vmatpush1.msra.mxu0 0.0
  %253 = vmatprep.subr.mxu0 0.0
  %254 = vmatpush1.msra.mxu0 0.0
  %255 = vmatprep.subr.mxu0 0.0
  %256 = vmatpush1.msra.mxu0 0.0
  %257 = vmatprep.subr.mxu0 0.0
  %258 = vmatpush1.msra.mxu0 0.0
  %259 = vmatprep.subr.mxu0 0.0
  %260 = vmatpush1.msra.mxu0 0.0
  %261 = vmatprep.subr.mxu0 0.0
  %262 = vmatpush1.msra.mxu0 0.0
  %263 = vmatprep.subr.mxu0 0.0
  %264 = vmatpush1.msra.mxu0 0.0
  %265 = vmatprep.subr.mxu0 0.0
  %266 = vmatpush1.msra.mxu0 0.0
  %267 = vmatprep.subr.mxu0 0.0
  %268 = vmatpush1.msra.mxu0 0.0
  %269 = vmatprep.subr.mxu0 0.0
  %270 = vmatpush1.msra.mxu0 0.0
  %271 = vmatprep.subr.mxu0 0.0
  %272 = vmatpush1.msra.mxu0 0.0
  %273 = vmatprep.subr.mxu0 0.0
  %274 = vmatpush1.msra.mxu0 0.0
  %275 = vmatprep.subr.mxu0 0.0
  %276 = vmatpush1.msra.mxu0 0.0
  %277 = vmatprep.subr.mxu0 0.0
  %278 = vmatpush1.msra.mxu0 0.0
  %279 = vmatprep.subr.mxu0 0.0
  %280 = vmatpush1.msra.mxu0 0.0
  %281 = vmatprep.subr.mxu0 0.0
  %282 = vmatpush1.msra.mxu0 0.0
  %283 = vmatprep.subr.mxu0 0.0
  %284 = vmatpush1.msra.mxu0 0.0
  %285 = vmatprep.subr.mxu0 0.0
  %286 = vmatpush1.msra.mxu0 0.0
  %287 = vmatprep.subr.mxu0 0.0
  %288 = vmatpush1.msra.mxu0 0.0
  %289 = vmatprep.subr.mxu0 0.0
  %290 = vmatpush1.msra.mxu0 0.0
  %291 = vmatprep.subr.mxu0 0.0
  %292 = vmatpush1.msra.mxu0 0.0
  %293 = vmatprep.subr.mxu0 0.0
  %294 = vmatpush1.msra.mxu0 0.0
  %295 = vmatprep.subr.mxu0 0.0
  %296 = vmatpush1.msra.mxu0 0.0
  %297 = vmatprep.subr.mxu0 0.0
  %298 = vmatpush1.msra.mxu0 0.0
  %299 = vmatprep.subr.mxu0 0.0
  %300 = vmatpush1.msra.mxu0 0.0
  %301 = vmatprep.subr.mxu0 0.0
  %302 = vmatpush1.msra.mxu0 0.0
  %303 = vmatprep.mubr.f32.mxu0 0.0
  %304 = vmatmul.mubr.f32.gmra.mrb[0].mxu0 %v228
  %v305 = vpop.f32.mrb[0].mxu0
  %v306 = vadd.f32 %v225, %v305
  %v307 = vpop.f32.mrb[0].mxu0
  %308 = vmatprep.mubr.f32.mxu0 0.0
  %309 = vmatmul.mubr.f32.gmra.mrb[0].mxu0 %v231
  %v310 = vpop.f32.mrb[0].mxu0
  %v311 = vadd.f32 %v225, %v310
  %v312 = vpop.f32.mrb[0].mxu0
  %313 = vmatprep.mubr.f32.mxu0 0.0
  %314 = vmatmul.mubr.f32.gmra.mrb[0].mxu0 %v234
  %v315 = vpop.f32.mrb[0].mxu0
  %v316 = vadd.f32 %v225, %v315
  %v317 = vpop.f32.mrb[0].mxu0
  %318 = vmatprep.mubr.f32.mxu0 0.0
  %319 = vmatmul.mubr.f32.gmra.mrb[0].mxu0 %v237
  %v320 = vpop.f32.mrb[0].mxu0
  %v321 = vadd.f32 %v225, %v320
  %v322 = vpop.f32.mrb[0].mxu0
  %323 = vdwg.mxu0
  %v324 = vld [vmem:[%s6] sm:$0xff]
  %v325 = vld [vmem:[%s7] sm:$0x1]
  %v327 = vlaneseq
  %v328 = vshrl.u32 %v327, 7
  %v329 = vsub.s32 0, %v328
  %v330 = vrot.slane %v325, %v329
  %332 = vmatprep.subr.mxu0 0.0
  %333 = vmatpush1.msra.mxu0 %v324
  %334 = vmatprep.subr.mxu0 0.0
  %335 = vmatpush1.msra.mxu0 0.0
  %336 = vmatprep.subr.mxu0 0.0
  %337 = vmatpush1.msra.mxu0 0.0
  %338 = vmatprep.subr.mxu0 0.0
  %339 = vmatpush1.msra.mxu0 0.0
  %340 = vmatprep.subr.mxu0 0.0
  %341 = vmatpush1.msra.mxu0 0.0
  %342 = vmatprep.subr.mxu0 0.0
  %343 = vmatpush1.msra.mxu0 0.0
  %344 = vmatprep.subr.mxu0 0.0
  %345 = vmatpush1.msra.mxu0 0.0
  %346 = vmatprep.subr.mxu0 0.0
  %347 = vmatpush1.msra.mxu0 0.0
  %348 = vmatprep.subr.mxu0 0.0
  %349 = vmatpush1.msra.mxu0 0.0
  %350 = vmatprep.subr.mxu0 0.0
  %351 = vmatpush1.msra.mxu0 0.0
  %352 = vmatprep.subr.mxu0 0.0
  %353 = vmatpush1.msra.mxu0 0.0
  %354 = vmatprep.subr.mxu0 0.0
  %355 = vmatpush1.msra.mxu0 0.0
  %356 = vmatprep.subr.mxu0 0.0
  %357 = vmatpush1.msra.mxu0 0.0
  %358 = vmatprep.subr.mxu0 0.0
  %359 = vmatpush1.msra.mxu0 0.0
  %360 = vmatprep.subr.mxu0 0.0
  %361 = vmatpush1.msra.mxu0 0.0
  %362 = vmatprep.subr.mxu0 0.0
  %363 = vmatpush1.msra.mxu0 0.0
  %364 = vmatprep.subr.mxu0 0.0
  %365 = vmatpush1.msra.mxu0 0.0
  %366 = vmatprep.subr.mxu0 0.0
  %367 = vmatpush1.msra.mxu0 0.0
  %368 = vmatprep.subr.mxu0 0.0
  %369 = vmatpush1.msra.mxu0 0.0
  %370 = vmatprep.subr.mxu0 0.0
  %371 = vmatpush1.msra.mxu0 0.0
  %372 = vmatprep.subr.mxu0 0.0
  %373 = vmatpush1.msra.mxu0 0.0
  %374 = vmatprep.subr.mxu0 0.0
  %375 = vmatpush1.msra.mxu0 0.0
  %376 = vmatprep.subr.mxu0 0.0
  %377 = vmatpush1.msra.mxu0 0.0
  %378 = vmatprep.subr.mxu0 0.0
  %379 = vmatpush1.msra.mxu0 0.0
  %380 = vmatprep.subr.mxu0 0.0
  %381 = vmatpush1.msra.mxu0 0.0
  %382 = vmatprep.subr.mxu0 0.0
  %383 = vmatpush1.msra.mxu0 0.0
  %384 = vmatprep.subr.mxu0 0.0
  %385 = vmatpush1.msra.mxu0 0.0
  %386 = vmatprep.subr.mxu0 0.0
  %387 = vmatpush1.msra.mxu0 0.0
  %388 = vmatprep.subr.mxu0 0.0
  %389 = vmatpush1.msra.mxu0 0.0
  %390 = vmatprep.subr.mxu0 0.0
  %391 = vmatpush1.msra.mxu0 0.0
  %392 = vmatprep.subr.mxu0 0.0
  %393 = vmatpush1.msra.mxu0 0.0
  %394 = vmatprep.subr.mxu0 0.0
  %395 = vmatpush1.msra.mxu0 0.0
  %396 = vmatprep.mubr.f32.mxu0 0.0
  %397 = vmatmul.mubr.f32.gmra.mrb[0].mxu0 %v228
  %v398 = vpop.f32.mrb[0].mxu0
  %v399 = vadd.f32 %v330, %v398
  %v400 = vpop.f32.mrb[0].mxu0
  %401 = vmatprep.mubr.f32.mxu0 0.0
  %402 = vmatmul.mubr.f32.gmra.mrb[0].mxu0 %v231
  %v403 = vpop.f32.mrb[0].mxu0
  %v404 = vadd.f32 %v330, %v403
  %v405 = vpop.f32.mrb[0].mxu0
  %406 = vmatprep.mubr.f32.mxu0 0.0
  %407 = vmatmul.mubr.f32.gmra.mrb[0].mxu0 %v234
  %v408 = vpop.f32.mrb[0].mxu0
  %v409 = vadd.f32 %v330, %v408
  %v410 = vpop.f32.mrb[0].mxu0
  %411 = vmatprep.mubr.f32.mxu0 0.0
  %412 = vmatmul.mubr.f32.gmra.mrb[0].mxu0 %v237
  %v413 = vpop.f32.mrb[0].mxu0
  %v414 = vadd.f32 %v330, %v413
  %v415 = vpop.f32.mrb[0].mxu0
  %416 = vdwg.mxu0
  %v417 = vsub.f32 0.0, %v306
  %v418 = vsub.f32 0.0, %v311
  %v419 = vsub.f32 0.0, %v316
  %v420 = vsub.f32 0.0, %v321
  %v421 = vmul.f32 %v417, 1.442695
  %v422 = vpow.pop %v421
  %v423 = vmul.f32 %v418, 1.442695
  %v424 = vpow.pop %v423
  %v425 = vmul.f32 %v419, 1.442695
  %v426 = vpow.pop %v425
  %v427 = vmul.f32 %v420, 1.442695
  %v428 = vpow.pop %v427
  %v429 = vadd.f32 %v422, 1.0
  %v430 = vadd.f32 %v424, 1.0
  %v431 = vadd.f32 %v426, 1.0
  %v432 = vadd.f32 %v428, 1.0
  %v433 = vrcp.pop %v429
  %v434 = vmul.f32 1.0, %v433
  %v435 = vrcp.pop %v430
  %v436 = vmul.f32 1.0, %v435
  %v437 = vrcp.pop %v431
  %v438 = vmul.f32 1.0, %v437
  %v439 = vrcp.pop %v432
  %v440 = vmul.f32 1.0, %v439
  %441 = vst.msk [vmem:[%s8] sm:$0xff] %vm138, %v434
  %442 = vst.msk [vmem:[%s8 + $0x8] sm:$0xff] %vm138, %v436
  %443 = vst.msk [vmem:[%s8 + $0x10] sm:$0xff] %vm138, %v438
  %444 = vst.msk [vmem:[%s8 + $0x18] sm:$0xff] %vm138, %v440
  %v445 = vsub.f32 0.0, %v399
  %v446 = vsub.f32 0.0, %v404
  %v447 = vsub.f32 0.0, %v409
  %v448 = vsub.f32 0.0, %v414
  %v449 = vmul.f32 %v445, 1.442695
  %v450 = vpow.pop %v449
  %v451 = vmul.f32 %v446, 1.442695
  %v452 = vpow.pop %v451
  %v453 = vmul.f32 %v447, 1.442695
  %v454 = vpow.pop %v453
  %v455 = vmul.f32 %v448, 1.442695
  %v456 = vpow.pop %v455
  %v457 = vadd.f32 %v450, 1.0
  %v458 = vadd.f32 %v452, 1.0
  %v459 = vadd.f32 %v454, 1.0
  %v460 = vadd.f32 %v456, 1.0
  %v461 = vrcp.pop %v457
  %v462 = vmul.f32 1.0, %v461
  %v463 = vrcp.pop %v458
  %v464 = vmul.f32 1.0, %v463
  %v465 = vrcp.pop %v459
  %v466 = vmul.f32 1.0, %v465
  %v467 = vrcp.pop %v460
  %v468 = vmul.f32 1.0, %v467
  %469 = vst.msk [vmem:[%s9] sm:$0xff] %vm138, %v462
  %470 = vst.msk [vmem:[%s9 + $0x8] sm:$0xff] %vm138, %v464
  %471 = vst.msk [vmem:[%s9 + $0x10] sm:$0xff] %vm138, %v466
  %472 = vst.msk [vmem:[%s9 + $0x18] sm:$0xff] %vm138, %v468
  // Predicated region
  $region34: #{ff_module_forward.2} parent=0 // pred_check
    _
  $region35: #{ff_module_forward.2} parent=0 // pred_check_branch
    %474 = sbr.rel (0) target = $region37
  $region36: #{ff_module_forward.2} parent=0 // pred_region
    _
  $region37: #{ff_module_forward.2} parent=0 // pred_fallthru
    _
  // Predicated region
  $region38: #{ff_module_forward.2} parent=0 // pred_check
    _
  $region39: #{ff_module_forward.2} parent=0 // pred_check_branch
    %476 = sbr.rel (0) target = $region41
  $region40: #{ff_module_forward.2} parent=0 // pred_region
    _
  $region41: #{ff_module_forward.2} parent=0 // pred_fallthru
    _
  // Predicated region
  $region42: #{ff_module_forward.2} parent=0 // pred_check
    _
  $region43: #{ff_module_forward.2} parent=0 // pred_check_branch
    %478 = sbr.rel (0) target = $region45
  $region44: #{ff_module_forward.2} parent=0 // pred_region
    _
  $region45: #{ff_module_forward.2} parent=0 // pred_fallthru
    _
  // Predicated region
  $region46: #{ff_module_forward.2} parent=0 // pred_check
    _
  $region47: #{ff_module_forward.2} parent=0 // pred_check_branch
    %480 = sbr.rel (0) target = $region49
  $region48: #{ff_module_forward.2} parent=0 // pred_region
    _
  $region49: #{ff_module_forward.2} parent=0 // pred_fallthru
    _

// kernel: ff_module_forward.3
$region0: #{ff_module_forward.3}
  #allocation0 [shape = 'u32[]', space=smem, size = 0x4, offset = 0x4, fixed_abs, tag = 'smem constant byte address 0x4 - core index']
  #allocation1 [shape = 'u32[144,128]{1,0:T(1,128)}', space=vmem, size = 0x12000, scoped, tag = 'internal scratch']
  %s0 = inlined_call_operand.vmem [shape: f32[2,512,36], index: 0, kind: input, shape index: {}]
  %s1 = inlined_call_operand.vmem [shape: f32[2,36,128], index: 1, kind: input, shape index: {}]
  %s2 = inlined_call_operand.vmem [shape: f32[2,1,128], index: 2, kind: input, shape index: {}]
  %s3 = inlined_call_operand.vmem [shape: f32[2,1,128], index: 3, kind: input, shape index: {}]
  %s4 = inlined_call_operand.vmem [shape: f32[512,128], index: 4, kind: input, shape index: {}]
  %s5 = inlined_call_operand.vmem [shape: f32[512,128], index: 5, kind: output, shape index: {}]
  %s6 = sld [smem:[#allocation0]]
  $region61: #{ff_module_forward.3} parent=0
    _
  %s8 = ssub.s32 1, %s6
  %s9 = scalar_select 0, %s8, %s6
  loop: start=0, step=1, limit=4
  $region2: #{ff_module_forward.3} parent=0 // loop_pre_header
    _
  $region3: #{ff_module_forward.3} parent=0 // loop_header
    %s11 = sphi 0, %s15
    %p12 = scmp.ge.s32.totalorder %s11, 4
    %s21 = sphi 0, %s23
    %s24 = sphi 0, %s21
    %s25 = sphi 0, %s24
    %s41 = sphi 0, %s25
    %s47 = sphi 0, %s49
    %s50 = sphi 0, %s47
    %s51 = sphi 0, %s50
    %s67 = sphi 0, %s51
    %s73 = sphi 0, %s75
    %s76 = sphi 0, %s73
    %s77 = sphi 0, %s76
    %s93 = sphi 0, %s77
    %s99 = sphi 0, %s101
    %s102 = sphi 0, %s99
    %s103 = sphi 0, %s102
    %s119 = sphi 0, %s103
    %s123 = sphi 0, %s123
    %s125 = sphi 0, %s123
    %s126 = sphi 0, %s125
    %s140 = sphi 0, %s126
    %s144 = sphi 0, %s144
    %s146 = sphi 0, %s144
    %s147 = sphi 0, %s146
    %s161 = sphi 0, %s147
  $region4: #{ff_module_forward.3} parent=0 // loop_header_branch
    %14 = sbr.rel (%p12) target = $region8
  $region5: #{ff_module_forward.3} parent=0 // loop_body
    %s16 = ssub.s32 %s11, 1
    %s17 = ssub.s32 %s11, 2
    %s18 = sadd.s32 %s11, 1
    %s19 = ssub.s32 %s11, %s18
    %p20 = scmp.eq.s32.totalorder %s19, 0
    %s22 = sadd.s32 %s21, 1
    %s23 = scalar_select %p20, %s21, %s22
    %p26 = pneg %p20
    %p27 = scmp.eq.s32.totalorder %s11, 1
    %p28 = por %p26, %p27
    %p29 = scmp.ne.s32.totalorder %s21, %s24
    %p30 = scmp.eq.s32.totalorder %s11, 0
    %p31 = por %p29, %p30
    %p32 = scmp.ne.s32.totalorder %s21, %s24
    %p33 = scmp.eq.s32.totalorder %s16, 1
    %p34 = por %p32, %p33
    %p35 = scmp.ne.s32.totalorder %s24, %s25
    %p36 = scmp.eq.s32.totalorder %s16, 0
    %p37 = por %p35, %p36
    %p38 = scmp.ne.s32.totalorder %s24, %s25
    %p39 = scmp.eq.s32.totalorder %s17, 1
    %p40 = por %p38, %p39
    %p42 = scmp.ne.s32.totalorder %s25, %s41
    %p43 = scmp.eq.s32.totalorder %s17, 0
    %p44 = por %p42, %p43
    %s45 = ssub.s32 %s11, %s18
    %p46 = scmp.eq.s32.totalorder %s45, 0
    %s48 = sadd.s32 %s47, 1
    %s49 = scalar_select %p46, %s47, %s48
    %p52 = pneg %p46
    %p53 = scmp.eq.s32.totalorder %s11, 1
    %p54 = por %p52, %p53
    %p55 = scmp.ne.s32.totalorder %s47, %s50
    %p56 = scmp.eq.s32.totalorder %s11, 0
    %p57 = por %p55, %p56
    %p58 = scmp.ne.s32.totalorder %s47, %s50
    %p59 = scmp.eq.s32.totalorder %s16, 1
    %p60 = por %p58, %p59
    %p61 = scmp.ne.s32.totalorder %s50, %s51
    %p62 = scmp.eq.s32.totalorder %s16, 0
    %p63 = por %p61, %p62
    %p64 = scmp.ne.s32.totalorder %s50, %s51
    %p65 = scmp.eq.s32.totalorder %s17, 1
    %p66 = por %p64, %p65
    %p68 = scmp.ne.s32.totalorder %s51, %s67
    %p69 = scmp.eq.s32.totalorder %s17, 0
    %p70 = por %p68, %p69
    %s71 = ssub.s32 %s11, %s18
    %p72 = scmp.eq.s32.totalorder %s71, 0
    %s74 = sadd.s32 %s73, 1
    %s75 = scalar_select %p72, %s73, %s74
    %p78 = pneg %p72
    %p79 = scmp.eq.s32.totalorder %s11, 1
    %p80 = por %p78, %p79
    %p81 = scmp.ne.s32.totalorder %s73, %s76
    %p82 = scmp.eq.s32.totalorder %s11, 0
    %p83 = por %p81, %p82
    %p84 = scmp.ne.s32.totalorder %s73, %s76
    %p85 = scmp.eq.s32.totalorder %s16, 1
    %p86 = por %p84, %p85
    %p87 = scmp.ne.s32.totalorder %s76, %s77
    %p88 = scmp.eq.s32.totalorder %s16, 0
    %p89 = por %p87, %p88
    %p90 = scmp.ne.s32.totalorder %s76, %s77
    %p91 = scmp.eq.s32.totalorder %s17, 1
    %p92 = por %p90, %p91
    %p94 = scmp.ne.s32.totalorder %s77, %s93
    %p95 = scmp.eq.s32.totalorder %s17, 0
    %p96 = por %p94, %p95
    %s97 = ssub.s32 %s11, %s18
    %p98 = scmp.eq.s32.totalorder %s97, 0
    %s100 = sadd.s32 %s99, 1
    %s101 = scalar_select %p98, %s99, %s100
    %p104 = pneg %p98
    %p105 = scmp.eq.s32.totalorder %s11, 1
    %p106 = por %p104, %p105
    %p107 = scmp.ne.s32.totalorder %s99, %s102
    %p108 = scmp.eq.s32.totalorder %s11, 0
    %p109 = por %p107, %p108
    %p110 = scmp.ne.s32.totalorder %s99, %s102
    %p111 = scmp.eq.s32.totalorder %s16, 1
    %p112 = por %p110, %p111
    %p113 = scmp.ne.s32.totalorder %s102, %s103
    %p114 = scmp.eq.s32.totalorder %s16, 0
    %p115 = por %p113, %p114
    %p116 = scmp.ne.s32.totalorder %s102, %s103
    %p117 = scmp.eq.s32.totalorder %s17, 1
    %p118 = por %p116, %p117
    %p120 = scmp.ne.s32.totalorder %s103, %s119
    %p121 = scmp.eq.s32.totalorder %s17, 0
    %p122 = por %p120, %p121
    %s124 = sadd.s32 %s123, 1
    %p127 = scmp.eq.s32.totalorder %s11, 1
    %p128 = scmp.ne.s32.totalorder %s123, %s125
    %p129 = scmp.eq.s32.totalorder %s11, 0
    %p130 = por %p128, %p129
    %p131 = scmp.ne.s32.totalorder %s123, %s125
    %p132 = scmp.eq.s32.totalorder %s16, 1
    %p133 = por %p131, %p132
    %p134 = scmp.ne.s32.totalorder %s125, %s126
    %p135 = scmp.eq.s32.totalorder %s16, 0
    %p136 = por %p134, %p135
    %p137 = scmp.ne.s32.totalorder %s125, %s126
    %p138 = scmp.eq.s32.totalorder %s17, 1
    %p139 = por %p137, %p138
    %p141 = scmp.ne.s32.totalorder %s126, %s140
    %p142 = scmp.eq.s32.totalorder %s17, 0
    %p143 = por %p141, %p142
    %s145 = sadd.s32 %s144, 1
    %p148 = scmp.eq.s32.totalorder %s11, 1
    %p149 = scmp.ne.s32.totalorder %s144, %s146
    %p150 = scmp.eq.s32.totalorder %s11, 0
    %p151 = por %p149, %p150
    %p152 = scmp.ne.s32.totalorder %s144, %s146
    %p153 = scmp.eq.s32.totalorder %s16, 1
    %p154 = por %p152, %p153
    %p155 = scmp.ne.s32.totalorder %s146, %s147
    %p156 = scmp.eq.s32.totalorder %s16, 0
    %p157 = por %p155, %p156
    %p158 = scmp.ne.s32.totalorder %s146, %s147
    %p159 = scmp.eq.s32.totalorder %s17, 1
    %p160 = por %p158, %p159
    %p162 = scmp.ne.s32.totalorder %s147, %s161
    %p163 = scmp.eq.s32.totalorder %s17, 0
    %p164 = por %p162, %p163
    %p165 = scmp.le.s32.totalorder 1, %s11
    %p166 = scmp.lt.s32.totalorder %s11, 3
    %p167 = pnand %p165, %p166
    %p168 = pneg %p167
    // Predicated region
    $region9: #{ff_module_forward.3} parent=5 // pred_check
      _
    $region10: #{ff_module_forward.3} parent=5 // pred_check_branch
      %170 = sbr.rel (%p167) target = $region12
    $region11: #{ff_module_forward.3} parent=5 // pred_region
      %s171 = ssub.s32 %s11, 1
      // Predicated region
      $region13: #{ff_module_forward.3} parent=11 // pred_check
        %p172 = pneg %p136
      $region14: #{ff_module_forward.3} parent=11 // pred_check_branch
        %174 = sbr.rel (%p172) target = $region16
      $region15: #{ff_module_forward.3} parent=11 // pred_region
        _
      $region16: #{ff_module_forward.3} parent=11 // pred_fallthru
        _
    $region12: #{ff_module_forward.3} parent=5 // pred_fallthru
      _
    %p175 = scmp.lt.s32.totalorder %s11, 2
    // Predicated region
    $region17: #{ff_module_forward.3} parent=5 // pred_check
      %p176 = pneg %p175
    $region18: #{ff_module_forward.3} parent=5 // pred_check_branch
      %178 = sbr.rel (%p176) target = $region20
    $region19: #{ff_module_forward.3} parent=5 // pred_region
      // Predicated region
      $region21: #{ff_module_forward.3} parent=19 // pred_check
        %p179 = pneg %p31
      $region22: #{ff_module_forward.3} parent=19 // pred_check_branch
        %181 = sbr.rel (%p179) target = $region24
      $region23: #{ff_module_forward.3} parent=19 // pred_region
        %p182 = scmp.lt.s32.totalorder %s11, 1
        %s183 = scalar_select %p182, %s11, 1
        %s184 = smul.addr %s183, 64
        %s185 = smul.addr %s184, 8
        %s186 = scalar_lea.vmem %s0, %s185
      $region24: #{ff_module_forward.3} parent=19 // pred_fallthru
        _
      // Predicated region
      $region25: #{ff_module_forward.3} parent=19 // pred_check
        %p187 = pneg %p57
      $region26: #{ff_module_forward.3} parent=19 // pred_check_branch
        %189 = sbr.rel (%p187) target = $region28
      $region27: #{ff_module_forward.3} parent=19 // pred_region
        %p190 = scmp.lt.s32.totalorder %s11, 1
        %s191 = scalar_select %p190, %s11, 1
        %s192 = smul.addr %s191, 5
        %s193 = smul.addr %s192, 8
        %s194 = scalar_lea.vmem %s1, %s193
      $region28: #{ff_module_forward.3} parent=19 // pred_fallthru
        _
      // Predicated region
      $region29: #{ff_module_forward.3} parent=19 // pred_check
        %p195 = pneg %p83
      $region30: #{ff_module_forward.3} parent=19 // pred_check_branch
        %197 = sbr.rel (%p195) target = $region32
      $region31: #{ff_module_forward.3} parent=19 // pred_region
        %p198 = scmp.lt.s32.totalorder %s11, 1
        %s199 = scalar_select %p198, %s11, 1
        %s200 = scalar_lea.vmem %s2, %s199
      $region32: #{ff_module_forward.3} parent=19 // pred_fallthru
        _
      // Predicated region
      $region33: #{ff_module_forward.3} parent=19 // pred_check
        %p201 = pneg %p109
      $region34: #{ff_module_forward.3} parent=19 // pred_check_branch
        %203 = sbr.rel (%p201) target = $region36
      $region35: #{ff_module_forward.3} parent=19 // pred_region
        %p204 = scmp.lt.s32.totalorder %s11, 1
        %s205 = scalar_select %p204, %s11, 1
        %s206 = scalar_lea.vmem %s3, %s205
      $region36: #{ff_module_forward.3} parent=19 // pred_fallthru
        _
    $region20: #{ff_module_forward.3} parent=5 // pred_fallthru
      _
    %p207 = scmp.le.s32.totalorder 1, %s11
    %p208 = scmp.lt.s32.totalorder %s11, 3
    %p209 = pnand %p207, %p208
    %p210 = pneg %p209
    // Predicated region
    $region37: #{ff_module_forward.3} parent=5 // pred_check
      _
    $region38: #{ff_module_forward.3} parent=5 // pred_check_branch
      %212 = sbr.rel (%p209) target = $region40
    $region39: #{ff_module_forward.3} parent=5 // pred_region
      %s213 = ssub.s32 %s11, 1
      %p214 = scmp.lt.s32.totalorder %s16, 1
      %s215 = scalar_select %p214, %s16, 1
      %s216 = smul.addr %s215, 64
      %s217 = smul.addr %s216, 8
      %s218 = scalar_lea.vmem %s0, %s217
      %p219 = pneg %p37
      %p220 = pneg %p34
      %p221 = scmp.lt.s32.totalorder %s16, 1
      %s222 = scalar_select %p221, %s16, 1
      %s223 = smul.addr %s222, 5
      %s224 = smul.addr %s223, 8
      %s225 = scalar_lea.vmem %s1, %s224
      %p226 = pneg %p63
      %p227 = pneg %p60
      %p228 = scmp.lt.s32.totalorder %s16, 1
      %s229 = scalar_select %p228, %s16, 1
      %s230 = scalar_lea.vmem %s2, %s229
      %p231 = pneg %p89
      %p232 = pneg %p86
      %p233 = scmp.lt.s32.totalorder %s16, 1
      %s234 = scalar_select %p233, %s16, 1
      %s235 = scalar_lea.vmem %s3, %s234
      %p236 = pneg %p115
      %p237 = pneg %p112
      %p238 = pneg %p136
      %p239 = pneg %p133
      %p240 = pneg %p157
      %p241 = pneg %p154
      %p242 = scmp.lt.s32.totalorder %s16, 1
      %s243 = scalar_select %p242, %s16, 1
      %s244 = smul.addr %s243, 64
      %s245 = smul.addr %s244, 8
      %s246 = scalar_lea.vmem %s0, %s245
      %p247 = scmp.lt.s32.totalorder %s16, 1
      %s248 = scalar_select %p247, %s16, 1
      %s249 = smul.addr %s248, 5
      %s250 = smul.addr %s249, 8
      %s251 = scalar_lea.vmem %s1, %s250
      %p252 = scmp.lt.s32.totalorder %s16, 1
      %s253 = scalar_select %p252, %s16, 1
      %s254 = scalar_lea.vmem %s2, %s253
      %p255 = scmp.lt.s32.totalorder %s16, 1
      %s256 = scalar_select %p255, %s16, 1
      %s257 = scalar_lea.vmem %s3, %s256
      %v258 = vld [vmem:[%s246] sm:$0xff]
      %v259 = vld [vmem:[%s246 + $0x8] sm:$0xff]
      %v260 = vld [vmem:[%s246 + $0x10] sm:$0xff]
      %v261 = vld [vmem:[%s246 + $0x18] sm:$0xff]
      %v262 = vld [vmem:[%s246 + $0x20] sm:$0xff]
      %v263 = vld [vmem:[%s246 + $0x28] sm:$0xff]
      %v264 = vld [vmem:[%s246 + $0x30] sm:$0xff]
      %v265 = vld [vmem:[%s246 + $0x38] sm:$0xff]
      %v266 = vld [vmem:[%s246 + $0x40] sm:$0xff]
      %v267 = vld [vmem:[%s246 + $0x48] sm:$0xff]
      %v268 = vld [vmem:[%s246 + $0x50] sm:$0xff]
      %v269 = vld [vmem:[%s246 + $0x58] sm:$0xff]
      %v270 = vld [vmem:[%s246 + $0x60] sm:$0xff]
      %v271 = vld [vmem:[%s246 + $0x68] sm:$0xff]
      %v272 = vld [vmem:[%s246 + $0x70] sm:$0xff]
      %v273 = vld [vmem:[%s246 + $0x78] sm:$0xff]
      %v274 = vld [vmem:[%s246 + $0x80] sm:$0xff]
      %v275 = vld [vmem:[%s246 + $0x88] sm:$0xff]
      %v276 = vld [vmem:[%s246 + $0x90] sm:$0xff]
      %v277 = vld [vmem:[%s246 + $0x98] sm:$0xff]
      %v278 = vld [vmem:[%s246 + $0xa0] sm:$0xff]
      %v279 = vld [vmem:[%s246 + $0xa8] sm:$0xff]
      %v280 = vld [vmem:[%s246 + $0xb0] sm:$0xff]
      %v281 = vld [vmem:[%s246 + $0xb8] sm:$0xff]
      %v282 = vld [vmem:[%s246 + $0xc0] sm:$0xff]
      %v283 = vld [vmem:[%s246 + $0xc8] sm:$0xff]
      %v284 = vld [vmem:[%s246 + $0xd0] sm:$0xff]
      %v285 = vld [vmem:[%s246 + $0xd8] sm:$0xff]
      %v286 = vld [vmem:[%s246 + $0xe0] sm:$0xff]
      %v287 = vld [vmem:[%s246 + $0xe8] sm:$0xff]
      %v288 = vld [vmem:[%s246 + $0xf0] sm:$0xff]
      %v289 = vld [vmem:[%s246 + $0xf8] sm:$0xff]
      %v290 = vld [vmem:[%s246 + $0x100] sm:$0xff]
      %v291 = vld [vmem:[%s246 + $0x108] sm:$0xff]
      %v292 = vld [vmem:[%s246 + $0x110] sm:$0xff]
      %v293 = vld [vmem:[%s246 + $0x118] sm:$0xff]
      %v294 = vld [vmem:[%s246 + $0x120] sm:$0xff]
      %v295 = vld [vmem:[%s246 + $0x128] sm:$0xff]
      %v296 = vld [vmem:[%s246 + $0x130] sm:$0xff]
      %v297 = vld [vmem:[%s246 + $0x138] sm:$0xff]
      %v298 = vld [vmem:[%s246 + $0x140] sm:$0xff]
      %v299 = vld [vmem:[%s246 + $0x148] sm:$0xff]
      %v300 = vld [vmem:[%s246 + $0x150] sm:$0xff]
      %v301 = vld [vmem:[%s246 + $0x158] sm:$0xff]
      %v302 = vld [vmem:[%s246 + $0x160] sm:$0xff]
      %v303 = vld [vmem:[%s246 + $0x168] sm:$0xff]
      %v304 = vld [vmem:[%s246 + $0x170] sm:$0xff]
      %v305 = vld [vmem:[%s246 + $0x178] sm:$0xff]
      %v306 = vld [vmem:[%s246 + $0x180] sm:$0xff]
      %v307 = vld [vmem:[%s246 + $0x188] sm:$0xff]
      %v308 = vld [vmem:[%s246 + $0x190] sm:$0xff]
      %v309 = vld [vmem:[%s246 + $0x198] sm:$0xff]
      %v310 = vld [vmem:[%s246 + $0x1a0] sm:$0xff]
      %v311 = vld [vmem:[%s246 + $0x1a8] sm:$0xff]
      %v312 = vld [vmem:[%s246 + $0x1b0] sm:$0xff]
      %v313 = vld [vmem:[%s246 + $0x1b8] sm:$0xff]
      %v314 = vld [vmem:[%s246 + $0x1c0] sm:$0xff]
      %v315 = vld [vmem:[%s246 + $0x1c8] sm:$0xff]
      %v316 = vld [vmem:[%s246 + $0x1d0] sm:$0xff]
      %v317 = vld [vmem:[%s246 + $0x1d8] sm:$0xff]
      %v318 = vld [vmem:[%s246 + $0x1e0] sm:$0xff]
      %v319 = vld [vmem:[%s246 + $0x1e8] sm:$0xff]
      %v320 = vld [vmem:[%s246 + $0x1f0] sm:$0xff]
      %v321 = vld [vmem:[%s246 + $0x1f8] sm:$0xff]
      %v322 = vld [vmem:[%s251] sm:$0xff]
      %v323 = vld [vmem:[%s251 + $0x8] sm:$0xff]
      %v324 = vld [vmem:[%s251 + $0x10] sm:$0xff]
      %v325 = vld [vmem:[%s251 + $0x18] sm:$0xff]
      %v326 = vld [vmem:[%s251 + $0x20] sm:$0xf]
      %vm327 = vcmask 293888
      %v329 = vsel %vm327, %v258, 0
      %v332 = vsel %vm327, %v259, 0
      %v335 = vsel %vm327, %v260, 0
      %v338 = vsel %vm327, %v261, 0
      %v341 = vsel %vm327, %v262, 0
      %v344 = vsel %vm327, %v263, 0
      %v347 = vsel %vm327, %v264, 0
      %v350 = vsel %vm327, %v265, 0
      %v353 = vsel %vm327, %v266, 0
      %v356 = vsel %vm327, %v267, 0
      %v359 = vsel %vm327, %v268, 0
      %v362 = vsel %vm327, %v269, 0
      %v365 = vsel %vm327, %v270, 0
      %v368 = vsel %vm327, %v271, 0
      %v371 = vsel %vm327, %v272, 0
      %v374 = vsel %vm327, %v273, 0
      %v377 = vsel %vm327, %v274, 0
      %v380 = vsel %vm327, %v275, 0
      %v383 = vsel %vm327, %v276, 0
      %v386 = vsel %vm327, %v277, 0
      %v389 = vsel %vm327, %v278, 0
      %v392 = vsel %vm327, %v279, 0
      %v395 = vsel %vm327, %v280, 0
      %v398 = vsel %vm327, %v281, 0
      %v401 = vsel %vm327, %v282, 0
      %v404 = vsel %vm327, %v283, 0
      %v407 = vsel %vm327, %v284, 0
      %v410 = vsel %vm327, %v285, 0
      %v413 = vsel %vm327, %v286, 0
      %v416 = vsel %vm327, %v287, 0
      %v419 = vsel %vm327, %v288, 0
      %v422 = vsel %vm327, %v289, 0
      %v425 = vsel %vm327, %v290, 0
      %v428 = vsel %vm327, %v291, 0
      %v431 = vsel %vm327, %v292, 0
      %v434 = vsel %vm327, %v293, 0
      %v437 = vsel %vm327, %v294, 0
      %v440 = vsel %vm327, %v295, 0
      %v443 = vsel %vm327, %v296, 0
      %v446 = vsel %vm327, %v297, 0
      %v449 = vsel %vm327, %v298, 0
      %v452 = vsel %vm327, %v299, 0
      %v455 = vsel %vm327, %v300, 0
      %v458 = vsel %vm327, %v301, 0
      %v461 = vsel %vm327, %v302, 0
      %v464 = vsel %vm327, %v303, 0
      %v467 = vsel %vm327, %v304, 0
      %v470 = vsel %vm327, %v305, 0
      %v473 = vsel %vm327, %v306, 0
      %v476 = vsel %vm327, %v307, 0
      %v479 = vsel %vm327, %v308, 0
      %v482 = vsel %vm327, %v309, 0
      %v485 = vsel %vm327, %v310, 0
      %v488 = vsel %vm327, %v311, 0
      %v491 = vsel %vm327, %v312, 0
      %v494 = vsel %vm327, %v313, 0
      %v497 = vsel %vm327, %v314, 0
      %v500 = vsel %vm327, %v315, 0
      %v503 = vsel %vm327, %v316, 0
      %v506 = vsel %vm327, %v317, 0
      %v509 = vsel %vm327, %v318, 0
      %v512 = vsel %vm327, %v319, 0
      %v515 = vsel %vm327, %v320, 0
      %v518 = vsel %vm327, %v321, 0
      %vm520 = vcmask 1043456
      %v522 = vsel %vm520, %v326, 0
      %524 = vmatprep.subr.mxu0 0.0
      %525 = vmatpush1.msra.mxu0 %v322
      %526 = vmatprep.subr.mxu0 0.0
      %527 = vmatpush1.msra.mxu0 %v323
      %528 = vmatprep.subr.mxu0 0.0
      %529 = vmatpush1.msra.mxu0 %v324
      %530 = vmatprep.subr.mxu0 0.0
      %531 = vmatpush1.msra.mxu0 %v325
      %532 = vmatprep.subr.mxu0 0.0
      %533 = vmatpush1.msra.mxu0 %v522
      %534 = vmatprep.subr.mxu0 0.0
      %535 = vmatpush1.msra.mxu0 0.0
      %536 = vmatprep.subr.mxu0 0.0
      %537 = vmatpush1.msra.mxu0 0.0
      %538 = vmatprep.subr.mxu0 0.0
      %539 = vmatpush1.msra.mxu0 0.0
      %540 = vmatprep.subr.mxu0 0.0
      %541 = vmatpush1.msra.mxu0 0.0
      %542 = vmatprep.subr.mxu0 0.0
      %543 = vmatpush1.msra.mxu0 0.0
      %544 = vmatprep.subr.mxu0 0.0
      %545 = vmatpush1.msra.mxu0 0.0
      %546 = vmatprep.subr.mxu0 0.0
      %547 = vmatpush1.msra.mxu0 0.0
      %548 = vmatprep.subr.mxu0 0.0
      %549 = vmatpush1.msra.mxu0 0.0
      %550 = vmatprep.subr.mxu0 0.0
      %551 = vmatpush1.msra.mxu0 0.0
      %552 = vmatprep.subr.mxu0 0.0
      %553 = vmatpush1.msra.mxu0 0.0
      %554 = vmatprep.subr.mxu0 0.0
      %555 = vmatpush1.msra.mxu0 0.0
      %556 = vmatprep.subr.mxu0 0.0
      %557 = vmatpush1.msra.mxu0 0.0
      %558 = vmatprep.subr.mxu0 0.0
      %559 = vmatpush1.msra.mxu0 0.0
      %560 = vmatprep.subr.mxu0 0.0
      %561 = vmatpush1.msra.mxu0 0.0
      %562 = vmatprep.subr.mxu0 0.0
      %563 = vmatpush1.msra.mxu0 0.0
      %564 = vmatprep.subr.mxu0 0.0
      %565 = vmatpush1.msra.mxu0 0.0
      %566 = vmatprep.subr.mxu0 0.0
      %567 = vmatpush1.msra.mxu0 0.0
      %568 = vmatprep.subr.mxu0 0.0
      %569 = vmatpush1.msra.mxu0 0.0
      %570 = vmatprep.subr.mxu0 0.0
      %571 = vmatpush1.msra.mxu0 0.0
      %572 = vmatprep.subr.mxu0 0.0
      %573 = vmatpush1.msra.mxu0 0.0
      %574 = vmatprep.subr.mxu0 0.0
      %575 = vmatpush1.msra.mxu0 0.0
      %576 = vmatprep.subr.mxu0 0.0
      %577 = vmatpush1.msra.mxu0 0.0
      %578 = vmatprep.subr.mxu0 0.0
      %579 = vmatpush1.msra.mxu0 0.0
      %580 = vmatprep.subr.mxu0 0.0
      %581 = vmatpush1.msra.mxu0 0.0
      %582 = vmatprep.subr.mxu0 0.0
      %583 = vmatpush1.msra.mxu0 0.0
      %584 = vmatprep.subr.mxu0 0.0
      %585 = vmatpush1.msra.mxu0 0.0
      %586 = vmatprep.subr.mxu0 0.0
      %587 = vmatpush1.msra.mxu0 0.0
      %588 = vmatprep.mubr.f32.mxu0 0.0
      %589 = vmatmul.mubr.f32.gmra.mrb[0].mxu0 %v329
      %v590 = vpop.f32.mrb[0].mxu0
      %v591 = vadd.f32 0.0, %v590
      %v592 = vpop.f32.mrb[0].mxu0
      %593 = vmatprep.mubr.f32.mxu0 0.0
      %594 = vmatmul.mubr.f32.gmra.mrb[0].mxu0 %v332
      %v595 = vpop.f32.mrb[0].mxu0
      %v596 = vadd.f32 0.0, %v595
      %v597 = vpop.f32.mrb[0].mxu0
      %598 = vmatprep.mubr.f32.mxu0 0.0
      %599 = vmatmul.mubr.f32.gmra.mrb[0].mxu0 %v335
      %v600 = vpop.f32.mrb[0].mxu0
      %v601 = vadd.f32 0.0, %v600
      %v602 = vpop.f32.mrb[0].mxu0
      %603 = vmatprep.mubr.f32.mxu0 0.0
      %604 = vmatmul.mubr.f32.gmra.mrb[0].mxu0 %v338
      %v605 = vpop.f32.mrb[0].mxu0
      %v606 = vadd.f32 0.0, %v605
      %v607 = vpop.f32.mrb[0].mxu0
      %608 = vmatprep.mubr.f32.mxu0 0.0
      %609 = vmatmul.mubr.f32.gmra.mrb[0].mxu0 %v341
      %v610 = vpop.f32.mrb[0].mxu0
      %v611 = vadd.f32 0.0, %v610
      %v612 = vpop.f32.mrb[0].mxu0
      %613 = vmatprep.mubr.f32.mxu0 0.0
      %614 = vmatmul.mubr.f32.gmra.mrb[0].mxu0 %v344
      %v615 = vpop.f32.mrb[0].mxu0
      %v616 = vadd.f32 0.0, %v615
      %v617 = vpop.f32.mrb[0].mxu0
      %618 = vmatprep.mubr.f32.mxu0 0.0
      %619 = vmatmul.mubr.f32.gmra.mrb[0].mxu0 %v347
      %v620 = vpop.f32.mrb[0].mxu0
      %v621 = vadd.f32 0.0, %v620
      %v622 = vpop.f32.mrb[0].mxu0
      %623 = vmatprep.mubr.f32.mxu0 0.0
      %624 = vmatmul.mubr.f32.gmra.mrb[0].mxu0 %v350
      %v625 = vpop.f32.mrb[0].mxu0
      %v626 = vadd.f32 0.0, %v625
      %v627 = vpop.f32.mrb[0].mxu0
      %628 = vmatprep.mubr.f32.mxu0 0.0
      %629 = vmatmul.mubr.f32.gmra.mrb[0].mxu0 %v353
      %v630 = vpop.f32.mrb[0].mxu0
      %v631 = vadd.f32 0.0, %v630
      %v632 = vpop.f32.mrb[0].mxu0
      %633 = vmatprep.mubr.f32.mxu0 0.0
      %634 = vmatmul.mubr.f32.gmra.mrb[0].mxu0 %v356
      %v635 = vpop.f32.mrb[0].mxu0
      %v636 = vadd.f32 0.0, %v635
      %v637 = vpop.f32.mrb[0].mxu0
      %638 = vmatprep.mubr.f32.mxu0 0.0
      %639 = vmatmul.mubr.f32.gmra.mrb[0].mxu0 %v359
      %v640 = vpop.f32.mrb[0].mxu0
      %v641 = vadd.f32 0.0, %v640
      %v642 = vpop.f32.mrb[0].mxu0
      %643 = vmatprep.mubr.f32.mxu0 0.0
      %644 = vmatmul.mubr.f32.gmra.mrb[0].mxu0 %v362
      %v645 = vpop.f32.mrb[0].mxu0
      %v646 = vadd.f32 0.0, %v645
      %v647 = vpop.f32.mrb[0].mxu0
      %648 = vmatprep.mubr.f32.mxu0 0.0
      %649 = vmatmul.mubr.f32.gmra.mrb[0].mxu0 %v365
      %v650 = vpop.f32.mrb[0].mxu0
      %v651 = vadd.f32 0.0, %v650
      %v652 = vpop.f32.mrb[0].mxu0
      %653 = vmatprep.mubr.f32.mxu0 0.0
      %654 = vmatmul.mubr.f32.gmra.mrb[0].mxu0 %v368
      %v655 = vpop.f32.mrb[0].mxu0
      %v656 = vadd.f32 0.0, %v655
      %v657 = vpop.f32.mrb[0].mxu0
      %658 = vmatprep.mubr.f32.mxu0 0.0
      %659 = vmatmul.mubr.f32.gmra.mrb[0].mxu0 %v371
      %v660 = vpop.f32.mrb[0].mxu0
      %v661 = vadd.f32 0.0, %v660
      %v662 = vpop.f32.mrb[0].mxu0
      %663 = vmatprep.mubr.f32.mxu0 0.0
      %664 = vmatmul.mubr.f32.gmra.mrb[0].mxu0 %v374
      %v665 = vpop.f32.mrb[0].mxu0
      %v666 = vadd.f32 0.0, %v665
      %v667 = vpop.f32.mrb[0].mxu0
      %668 = vmatprep.mubr.f32.mxu0 0.0
      %669 = vmatmul.mubr.f32.gmra.mrb[0].mxu0 %v377
      %v670 = vpop.f32.mrb[0].mxu0
      %v671 = vadd.f32 0.0, %v670
      %v672 = vpop.f32.mrb[0].mxu0
      %673 = vmatprep.mubr.f32.mxu0 0.0
      %674 = vmatmul.mubr.f32.gmra.mrb[0].mxu0 %v380
      %v675 = vpop.f32.mrb[0].mxu0
      %v676 = vadd.f32 0.0, %v675
      %v677 = vpop.f32.mrb[0].mxu0
      %678 = vmatprep.mubr.f32.mxu0 0.0
      %679 = vmatmul.mubr.f32.gmra.mrb[0].mxu0 %v383
      %v680 = vpop.f32.mrb[0].mxu0
      %v681 = vadd.f32 0.0, %v680
      %v682 = vpop.f32.mrb[0].mxu0
      %683 = vmatprep.mubr.f32.mxu0 0.0
      %684 = vmatmul.mubr.f32.gmra.mrb[0].mxu0 %v386
      %v685 = vpop.f32.mrb[0].mxu0
      %v686 = vadd.f32 0.0, %v685
      %v687 = vpop.f32.mrb[0].mxu0
      %688 = vmatprep.mubr.f32.mxu0 0.0
      %689 = vmatmul.mubr.f32.gmra.mrb[0].mxu0 %v389
      %v690 = vpop.f32.mrb[0].mxu0
      %v691 = vadd.f32 0.0, %v690
      %v692 = vpop.f32.mrb[0].mxu0
      %693 = vmatprep.mubr.f32.mxu0 0.0
      %694 = vmatmul.mubr.f32.gmra.mrb[0].mxu0 %v392
      %v695 = vpop.f32.mrb[0].mxu0
      %v696 = vadd.f32 0.0, %v695
      %v697 = vpop.f32.mrb[0].mxu0
      %698 = vmatprep.mubr.f32.mxu0 0.0
      %699 = vmatmul.mubr.f32.gmra.mrb[0].mxu0 %v395
      %v700 = vpop.f32.mrb[0].mxu0
      %v701 = vadd.f32 0.0, %v700
      %v702 = vpop.f32.mrb[0].mxu0
      %703 = vmatprep.mubr.f32.mxu0 0.0
      %704 = vmatmul.mubr.f32.gmra.mrb[0].mxu0 %v398
      %v705 = vpop.f32.mrb[0].mxu0
      %v706 = vadd.f32 0.0, %v705
      %v707 = vpop.f32.mrb[0].mxu0
      %708 = vmatprep.mubr.f32.mxu0 0.0
      %709 = vmatmul.mubr.f32.gmra.mrb[0].mxu0 %v401
      %v710 = vpop.f32.mrb[0].mxu0
      %v711 = vadd.f32 0.0, %v710
      %v712 = vpop.f32.mrb[0].mxu0
      %713 = vmatprep.mubr.f32.mxu0 0.0
      %714 = vmatmul.mubr.f32.gmra.mrb[0].mxu0 %v404
      %v715 = vpop.f32.mrb[0].mxu0
      %v716 = vadd.f32 0.0, %v715
      %v717 = vpop.f32.mrb[0].mxu0
      %718 = vmatprep.mubr.f32.mxu0 0.0
      %719 = vmatmul.mubr.f32.gmra.mrb[0].mxu0 %v407
      %v720 = vpop.f32.mrb[0].mxu0
      %v721 = vadd.f32 0.0, %v720
      %v722 = vpop.f32.mrb[0].mxu0
      %723 = vmatprep.mubr.f32.mxu0 0.0
      %724 = vmatmul.mubr.f32.gmra.mrb[0].mxu0 %v410
      %v725 = vpop.f32.mrb[0].mxu0
      %v726 = vadd.f32 0.0, %v725
      %v727 = vpop.f32.mrb[0].mxu0
      %728 = vmatprep.mubr.f32.mxu0 0.0
      %729 = vmatmul.mubr.f32.gmra.mrb[0].mxu0 %v413
      %v730 = vpop.f32.mrb[0].mxu0
      %v731 = vadd.f32 0.0, %v730
      %v732 = vpop.f32.mrb[0].mxu0
      %733 = vmatprep.mubr.f32.mxu0 0.0
      %734 = vmatmul.mubr.f32.gmra.mrb[0].mxu0 %v416
      %v735 = vpop.f32.mrb[0].mxu0
      %v736 = vadd.f32 0.0, %v735
      %v737 = vpop.f32.mrb[0].mxu0
      %738 = vmatprep.mubr.f32.mxu0 0.0
      %739 = vmatmul.mubr.f32.gmra.mrb[0].mxu0 %v419
      %v740 = vpop.f32.mrb[0].mxu0
      %v741 = vadd.f32 0.0, %v740
      %v742 = vpop.f32.mrb[0].mxu0
      %743 = vmatprep.mubr.f32.mxu0 0.0
      %744 = vmatmul.mubr.f32.gmra.mrb[0].mxu0 %v422
      %v745 = vpop.f32.mrb[0].mxu0
      %v746 = vadd.f32 0.0, %v745
      %v747 = vpop.f32.mrb[0].mxu0
      %748 = vmatprep.mubr.f32.mxu0 0.0
      %749 = vmatmul.mubr.f32.gmra.mrb[0].mxu0 %v425
      %v750 = vpop.f32.mrb[0].mxu0
      %v751 = vadd.f32 0.0, %v750
      %v752 = vpop.f32.mrb[0].mxu0
      %753 = vmatprep.mubr.f32.mxu0 0.0
      %754 = vmatmul.mubr.f32.gmra.mrb[0].mxu0 %v428
      %v755 = vpop.f32.mrb[0].mxu0
      %v756 = vadd.f32 0.0, %v755
      %v757 = vpop.f32.mrb[0].mxu0
      %758 = vmatprep.mubr.f32.mxu0 0.0
      %759 = vmatmul.mubr.f32.gmra.mrb[0].mxu0 %v431
      %v760 = vpop.f32.mrb[0].mxu0
      %v761 = vadd.f32 0.0, %v760
      %v762 = vpop.f32.mrb[0].mxu0
      %763 = vmatprep.mubr.f32.mxu0 0.0
      %764 = vmatmul.mubr.f32.gmra.mrb[0].mxu0 %v434
      %v765 = vpop.f32.mrb[0].mxu0
      %v766 = vadd.f32 0.0, %v765
      %v767 = vpop.f32.mrb[0].mxu0
      %768 = vmatprep.mubr.f32.mxu0 0.0
      %769 = vmatmul.mubr.f32.gmra.mrb[0].mxu0 %v437
      %v770 = vpop.f32.mrb[0].mxu0
      %v771 = vadd.f32 0.0, %v770
      %v772 = vpop.f32.mrb[0].mxu0
      %773 = vmatprep.mubr.f32.mxu0 0.0
      %774 = vmatmul.mubr.f32.gmra.mrb[0].mxu0 %v440
      %v775 = vpop.f32.mrb[0].mxu0
      %v776 = vadd.f32 0.0, %v775
      %v777 = vpop.f32.mrb[0].mxu0
      %778 = vmatprep.mubr.f32.mxu0 0.0
      %779 = vmatmul.mubr.f32.gmra.mrb[0].mxu0 %v443
      %v780 = vpop.f32.mrb[0].mxu0
      %v781 = vadd.f32 0.0, %v780
      %v782 = vpop.f32.mrb[0].mxu0
      %783 = vmatprep.mubr.f32.mxu0 0.0
      %784 = vmatmul.mubr.f32.gmra.mrb[0].mxu0 %v446
      %v785 = vpop.f32.mrb[0].mxu0
      %v786 = vadd.f32 0.0, %v785
      %v787 = vpop.f32.mrb[0].mxu0
      %788 = vmatprep.mubr.f32.mxu0 0.0
      %789 = vmatmul.mubr.f32.gmra.mrb[0].mxu0 %v449
      %v790 = vpop.f32.mrb[0].mxu0
      %v791 = vadd.f32 0.0, %v790
      %v792 = vpop.f32.mrb[0].mxu0
      %793 = vmatprep.mubr.f32.mxu0 0.0
      %794 = vmatmul.mubr.f32.gmra.mrb[0].mxu0 %v452
      %v795 = vpop.f32.mrb[0].mxu0
      %v796 = vadd.f32 0.0, %v795
      %v797 = vpop.f32.mrb[0].mxu0
      %798 = vmatprep.mubr.f32.mxu0 0.0
      %799 = vmatmul.mubr.f32.gmra.mrb[0].mxu0 %v455
      %v800 = vpop.f32.mrb[0].mxu0
      %v801 = vadd.f32 0.0, %v800
      %v802 = vpop.f32.mrb[0].mxu0
      %803 = vmatprep.mubr.f32.mxu0 0.0
      %804 = vmatmul.mubr.f32.gmra.mrb[0].mxu0 %v458
      %v805 = vpop.f32.mrb[0].mxu0
      %v806 = vadd.f32 0.0, %v805
      %v807 = vpop.f32.mrb[0].mxu0
      %808 = vmatprep.mubr.f32.mxu0 0.0
      %809 = vmatmul.mubr.f32.gmra.mrb[0].mxu0 %v461
      %v810 = vpop.f32.mrb[0].mxu0
      %v811 = vadd.f32 0.0, %v810
      %v812 = vpop.f32.mrb[0].mxu0
      %813 = vmatprep.mubr.f32.mxu0 0.0
      %814 = vmatmul.mubr.f32.gmra.mrb[0].mxu0 %v464
      %v815 = vpop.f32.mrb[0].mxu0
      %v816 = vadd.f32 0.0, %v815
      %v817 = vpop.f32.mrb[0].mxu0
      %818 = vmatprep.mubr.f32.mxu0 0.0
      %819 = vmatmul.mubr.f32.gmra.mrb[0].mxu0 %v467
      %v820 = vpop.f32.mrb[0].mxu0
      %v821 = vadd.f32 0.0, %v820
      %v822 = vpop.f32.mrb[0].mxu0
      %823 = vmatprep.mubr.f32.mxu0 0.0
      %824 = vmatmul.mubr.f32.gmra.mrb[0].mxu0 %v470
      %v825 = vpop.f32.mrb[0].mxu0
      %v826 = vadd.f32 0.0, %v825
      %v827 = vpop.f32.mrb[0].mxu0
      %828 = vmatprep.mubr.f32.mxu0 0.0
      %829 = vmatmul.mubr.f32.gmra.mrb[0].mxu0 %v473
      %v830 = vpop.f32.mrb[0].mxu0
      %v831 = vadd.f32 0.0, %v830
      %v832 = vpop.f32.mrb[0].mxu0
      %833 = vmatprep.mubr.f32.mxu0 0.0
      %834 = vmatmul.mubr.f32.gmra.mrb[0].mxu0 %v476
      %v835 = vpop.f32.mrb[0].mxu0
      %v836 = vadd.f32 0.0, %v835
      %v837 = vpop.f32.mrb[0].mxu0
      %838 = vmatprep.mubr.f32.mxu0 0.0
      %839 = vmatmul.mubr.f32.gmra.mrb[0].mxu0 %v479
      %v840 = vpop.f32.mrb[0].mxu0
      %v841 = vadd.f32 0.0, %v840
      %v842 = vpop.f32.mrb[0].mxu0
      %843 = vmatprep.mubr.f32.mxu0 0.0
      %844 = vmatmul.mubr.f32.gmra.mrb[0].mxu0 %v482
      %v845 = vpop.f32.mrb[0].mxu0
      %v846 = vadd.f32 0.0, %v845
      %v847 = vpop.f32.mrb[0].mxu0
      %848 = vmatprep.mubr.f32.mxu0 0.0
      %849 = vmatmul.mubr.f32.gmra.mrb[0].mxu0 %v485
      %v850 = vpop.f32.mrb[0].mxu0
      %v851 = vadd.f32 0.0, %v850
      %v852 = vpop.f32.mrb[0].mxu0
      %853 = vmatprep.mubr.f32.mxu0 0.0
      %854 = vmatmul.mubr.f32.gmra.mrb[0].mxu0 %v488
      %v855 = vpop.f32.mrb[0].mxu0
      %v856 = vadd.f32 0.0, %v855
      %v857 = vpop.f32.mrb[0].mxu0
      %858 = vmatprep.mubr.f32.mxu0 0.0
      %859 = vmatmul.mubr.f32.gmra.mrb[0].mxu0 %v491
      %v860 = vpop.f32.mrb[0].mxu0
      %v861 = vadd.f32 0.0, %v860
      %v862 = vpop.f32.mrb[0].mxu0
      %863 = vmatprep.mubr.f32.mxu0 0.0
      %864 = vmatmul.mubr.f32.gmra.mrb[0].mxu0 %v494
      %v865 = vpop.f32.mrb[0].mxu0
      %v866 = vadd.f32 0.0, %v865
      %v867 = vpop.f32.mrb[0].mxu0
      %868 = vmatprep.mubr.f32.mxu0 0.0
      %869 = vmatmul.mubr.f32.gmra.mrb[0].mxu0 %v497
      %v870 = vpop.f32.mrb[0].mxu0
      %v871 = vadd.f32 0.0, %v870
      %v872 = vpop.f32.mrb[0].mxu0
      %873 = vmatprep.mubr.f32.mxu0 0.0
      %874 = vmatmul.mubr.f32.gmra.mrb[0].mxu0 %v500
      %v875 = vpop.f32.mrb[0].mxu0
      %v876 = vadd.f32 0.0, %v875
      %v877 = vpop.f32.mrb[0].mxu0
      %878 = vmatprep.mubr.f32.mxu0 0.0
      %879 = vmatmul.mubr.f32.gmra.mrb[0].mxu0 %v503
      %v880 = vpop.f32.mrb[0].mxu0
      %v881 = vadd.f32 0.0, %v880
      %v882 = vpop.f32.mrb[0].mxu0
      %883 = vmatprep.mubr.f32.mxu0 0.0
      %884 = vmatmul.mubr.f32.gmra.mrb[0].mxu0 %v506
      %v885 = vpop.f32.mrb[0].mxu0
      %v886 = vadd.f32 0.0, %v885
      %v887 = vpop.f32.mrb[0].mxu0
      %888 = vmatprep.mubr.f32.mxu0 0.0
      %889 = vmatmul.mubr.f32.gmra.mrb[0].mxu0 %v509
      %v890 = vpop.f32.mrb[0].mxu0
      %v891 = vadd.f32 0.0, %v890
      %v892 = vpop.f32.mrb[0].mxu0
      %893 = vmatprep.mubr.f32.mxu0 0.0
      %894 = vmatmul.mubr.f32.gmra.mrb[0].mxu0 %v512
      %v895 = vpop.f32.mrb[0].mxu0
      %v896 = vadd.f32 0.0, %v895
      %v897 = vpop.f32.mrb[0].mxu0
      %898 = vmatprep.mubr.f32.mxu0 0.0
      %899 = vmatmul.mubr.f32.gmra.mrb[0].mxu0 %v515
      %v900 = vpop.f32.mrb[0].mxu0
      %v901 = vadd.f32 0.0, %v900
      %v902 = vpop.f32.mrb[0].mxu0
      %903 = vmatprep.mubr.f32.mxu0 0.0
      %904 = vmatmul.mubr.f32.gmra.mrb[0].mxu0 %v518
      %v905 = vpop.f32.mrb[0].mxu0
      %v906 = vadd.f32 0.0, %v905
      %v907 = vpop.f32.mrb[0].mxu0
      %908 = vdwg.mxu0
      %v909 = vadd.f32 %v591, %v596
      %v910 = vadd.f32 %v909, %v601
      %v911 = vadd.f32 %v910, %v606
      %v912 = vadd.f32 %v911, %v611
      %v913 = vadd.f32 %v912, %v616
      %v914 = vadd.f32 %v913, %v621
      %v915 = vadd.f32 %v914, %v626
      %v916 = vadd.f32 %v915, %v631
      %v917 = vadd.f32 %v916, %v636
      %v918 = vadd.f32 %v917, %v641
      %v919 = vadd.f32 %v918, %v646
      %v920 = vadd.f32 %v919, %v651
      %v921 = vadd.f32 %v920, %v656
      %v922 = vadd.f32 %v921, %v661
      %v923 = vadd.f32 %v922, %v666
      %v924 = vadd.f32 %v923, %v671
      %v925 = vadd.f32 %v924, %v676
      %v926 = vadd.f32 %v925, %v681
      %v927 = vadd.f32 %v926, %v686
      %v928 = vadd.f32 %v927, %v691
      %v929 = vadd.f32 %v928, %v696
      %v930 = vadd.f32 %v929, %v701
      %v931 = vadd.f32 %v930, %v706
      %v932 = vadd.f32 %v931, %v711
      %v933 = vadd.f32 %v932, %v716
      %v934 = vadd.f32 %v933, %v721
      %v935 = vadd.f32 %v934, %v726
      %v936 = vadd.f32 %v935, %v731
      %v937 = vadd.f32 %v936, %v736
      %v938 = vadd.f32 %v937, %v741
      %v939 = vadd.f32 %v938, %v746
      %v940 = vadd.f32 %v939, %v751
      %v941 = vadd.f32 %v940, %v756
      %v942 = vadd.f32 %v941, %v761
      %v943 = vadd.f32 %v942, %v766
      %v944 = vadd.f32 %v943, %v771
      %v945 = vadd.f32 %v944, %v776
      %v946 = vadd.f32 %v945, %v781
      %v947 = vadd.f32 %v946, %v786
      %v948 = vadd.f32 %v947, %v791
      %v949 = vadd.f32 %v948, %v796
      %v950 = vadd.f32 %v949, %v801
      %v951 = vadd.f32 %v950, %v806
      %v952 = vadd.f32 %v951, %v811
      %v953 = vadd.f32 %v952, %v816
      %v954 = vadd.f32 %v953, %v821
      %v955 = vadd.f32 %v954, %v826
      %v956 = vadd.f32 %v955, %v831
      %v957 = vadd.f32 %v956, %v836
      %v958 = vadd.f32 %v957, %v841
      %v959 = vadd.f32 %v958, %v846
      %v960 = vadd.f32 %v959, %v851
      %v961 = vadd.f32 %v960, %v856
      %v962 = vadd.f32 %v961, %v861
      %v963 = vadd.f32 %v962, %v866
      %v964 = vadd.f32 %v963, %v871
      %v965 = vadd.f32 %v964, %v876
      %v966 = vadd.f32 %v965, %v881
      %v967 = vadd.f32 %v966, %v886
      %v968 = vadd.f32 %v967, %v891
      %v969 = vadd.f32 %v968, %v896
      %v970 = vadd.f32 %v969, %v901
      %v971 = vadd.f32 %v970, %v906
      %v972 = vrot.slane %v971, 4
      %v973 = vadd.f32 %v971, %v972
      %v974 = vrot.slane %v973, 2
      %v975 = vadd.f32 %v973, %v974
      %v976 = vrot.slane %v975, 1
      %v977 = vadd.f32 %v975, %v976
      %v978 = vmul.f32 %v591, %v591
      %v979 = vmul.f32 %v596, %v596
      %v980 = vmul.f32 %v601, %v601
      %v981 = vmul.f32 %v606, %v606
      %v982 = vmul.f32 %v611, %v611
      %v983 = vmul.f32 %v616, %v616
      %v984 = vmul.f32 %v621, %v621
      %v985 = vmul.f32 %v626, %v626
      %v986 = vmul.f32 %v631, %v631
      %v987 = vmul.f32 %v636, %v636
      %v988 = vmul.f32 %v641, %v641
      %v989 = vmul.f32 %v646, %v646
      %v990 = vmul.f32 %v651, %v651
      %v991 = vmul.f32 %v656, %v656
      %v992 = vmul.f32 %v661, %v661
      %v993 = vmul.f32 %v666, %v666
      %v994 = vmul.f32 %v671, %v671
      %v995 = vmul.f32 %v676, %v676
      %v996 = vmul.f32 %v681, %v681
      %v997 = vmul.f32 %v686, %v686
      %v998 = vmul.f32 %v691, %v691
      %v999 = vmul.f32 %v696, %v696
      %v1000 = vmul.f32 %v701, %v701
      %v1001 = vmul.f32 %v706, %v706
      %v1002 = vmul.f32 %v711, %v711
      %v1003 = vmul.f32 %v716, %v716
      %v1004 = vmul.f32 %v721, %v721
      %v1005 = vmul.f32 %v726, %v726
      %v1006 = vmul.f32 %v731, %v731
      %v1007 = vmul.f32 %v736, %v736
      %v1008 = vmul.f32 %v741, %v741
      %v1009 = vmul.f32 %v746, %v746
      %v1010 = vmul.f32 %v751, %v751
      %v1011 = vmul.f32 %v756, %v756
      %v1012 = vmul.f32 %v761, %v761
      %v1013 = vmul.f32 %v766, %v766
      %v1014 = vmul.f32 %v771, %v771
      %v1015 = vmul.f32 %v776, %v776
      %v1016 = vmul.f32 %v781, %v781
      %v1017 = vmul.f32 %v786, %v786
      %v1018 = vmul.f32 %v791, %v791
      %v1019 = vmul.f32 %v796, %v796
      %v1020 = vmul.f32 %v801, %v801
      %v1021 = vmul.f32 %v806, %v806
      %v1022 = vmul.f32 %v811, %v811
      %v1023 = vmul.f32 %v816, %v816
      %v1024 = vmul.f32 %v821, %v821
      %v1025 = vmul.f32 %v826, %v826
      %v1026 = vmul.f32 %v831, %v831
      %v1027 = vmul.f32 %v836, %v836
      %v1028 = vmul.f32 %v841, %v841
      %v1029 = vmul.f32 %v846, %v846
      %v1030 = vmul.f32 %v851, %v851
      %v1031 = vmul.f32 %v856, %v856
      %v1032 = vmul.f32 %v861, %v861
      %v1033 = vmul.f32 %v866, %v866
      %v1034 = vmul.f32 %v871, %v871
      %v1035 = vmul.f32 %v876, %v876
      %v1036 = vmul.f32 %v881, %v881
      %v1037 = vmul.f32 %v886, %v886
      %v1038 = vmul.f32 %v891, %v891
      %v1039 = vmul.f32 %v896, %v896
      %v1040 = vmul.f32 %v901, %v901
      %v1041 = vmul.f32 %v906, %v906
      %v1042 = vadd.f32 %v978, %v979
      %v1043 = vadd.f32 %v1042, %v980
      %v1044 = vadd.f32 %v1043, %v981
      %v1045 = vadd.f32 %v1044, %v982
      %v1046 = vadd.f32 %v1045, %v983
      %v1047 = vadd.f32 %v1046, %v984
      %v1048 = vadd.f32 %v1047, %v985
      %v1049 = vadd.f32 %v1048, %v986
      %v1050 = vadd.f32 %v1049, %v987
      %v1051 = vadd.f32 %v1050, %v988
      %v1052 = vadd.f32 %v1051, %v989
      %v1053 = vadd.f32 %v1052, %v990
      %v1054 = vadd.f32 %v1053, %v991
      %v1055 = vadd.f32 %v1054, %v992
      %v1056 = vadd.f32 %v1055, %v993
      %v1057 = vadd.f32 %v1056, %v994
      %v1058 = vadd.f32 %v1057, %v995
      %v1059 = vadd.f32 %v1058, %v996
      %v1060 = vadd.f32 %v1059, %v997
      %v1061 = vadd.f32 %v1060, %v998
      %v1062 = vadd.f32 %v1061, %v999
      %v1063 = vadd.f32 %v1062, %v1000
      %v1064 = vadd.f32 %v1063, %v1001
      %v1065 = vadd.f32 %v1064, %v1002
      %v1066 = vadd.f32 %v1065, %v1003
      %v1067 = vadd.f32 %v1066, %v1004
      %v1068 = vadd.f32 %v1067, %v1005
      %v1069 = vadd.f32 %v1068, %v1006
      %v1070 = vadd.f32 %v1069, %v1007
      %v1071 = vadd.f32 %v1070, %v1008
      %v1072 = vadd.f32 %v1071, %v1009
      %v1073 = vadd.f32 %v1072, %v1010
      %v1074 = vadd.f32 %v1073, %v1011
      %v1075 = vadd.f32 %v1074, %v1012
      %v1076 = vadd.f32 %v1075, %v1013
      %v1077 = vadd.f32 %v1076, %v1014
      %v1078 = vadd.f32 %v1077, %v1015
      %v1079 = vadd.f32 %v1078, %v1016
      %v1080 = vadd.f32 %v1079, %v1017
      %v1081 = vadd.f32 %v1080, %v1018
      %v1082 = vadd.f32 %v1081, %v1019
      %v1083 = vadd.f32 %v1082, %v1020
      %v1084 = vadd.f32 %v1083, %v1021
      %v1085 = vadd.f32 %v1084, %v1022
      %v1086 = vadd.f32 %v1085, %v1023
      %v1087 = vadd.f32 %v1086, %v1024
      %v1088 = vadd.f32 %v1087, %v1025
      %v1089 = vadd.f32 %v1088, %v1026
      %v1090 = vadd.f32 %v1089, %v1027
      %v1091 = vadd.f32 %v1090, %v1028
      %v1092 = vadd.f32 %v1091, %v1029
      %v1093 = vadd.f32 %v1092, %v1030
      %v1094 = vadd.f32 %v1093, %v1031
      %v1095 = vadd.f32 %v1094, %v1032
      %v1096 = vadd.f32 %v1095, %v1033
      %v1097 = vadd.f32 %v1096, %v1034
      %v1098 = vadd.f32 %v1097, %v1035
      %v1099 = vadd.f32 %v1098, %v1036
      %v1100 = vadd.f32 %v1099, %v1037
      %v1101 = vadd.f32 %v1100, %v1038
      %v1102 = vadd.f32 %v1101, %v1039
      %v1103 = vadd.f32 %v1102, %v1040
      %v1104 = vadd.f32 %v1103, %v1041
      %v1105 = vrot.slane %v1104, 4
      %v1106 = vadd.f32 %v1104, %v1105
      %v1107 = vrot.slane %v1106, 2
      %v1108 = vadd.f32 %v1106, %v1107
      %v1109 = vrot.slane %v1108, 1
      %v1110 = vadd.f32 %v1108, %v1109
      %v1111 = vmul.f32 %v977, 0.001953125
      %v1112 = vmul.f32 %v1110, 0.001953125
      %v1113 = vmul.f32 %v1111, %v1111
      %v1114 = vsub.f32 %v1112, %v1113
      %v1115 = vmax.f32 %v1114, 0.0
      %v1116 = vadd.f32 %v1115, 1e-05
      %v1117 = vrsqrt.pop %v1116
      %v1118 = vld [vmem:[%s254] sm:$0x1]
      %v1119 = vmul.f32 %v1117, %v1118
      %v1120 = vld [vmem:[%s257] sm:$0x1]
      %v1121 = vmul.f32 %v1111, %v1119
      %v1122 = vsub.f32 %v1120, %v1121
      %v1123 = vlaneseq
      %v1124 = vshrl.u32 %v1123, 7
      %v1125 = vsub.s32 0, %v1124
      %v1126 = vrot.slane %v1119, %v1125
      %v1127 = vmul.f32 %v591, %v1126
      %v1128 = vmul.f32 %v596, %v1126
      %v1129 = vmul.f32 %v601, %v1126
      %v1130 = vmul.f32 %v606, %v1126
      %v1131 = vmul.f32 %v611, %v1126
      %v1132 = vmul.f32 %v616, %v1126
      %v1133 = vmul.f32 %v621, %v1126
      %v1134 = vmul.f32 %v626, %v1126
      %v1135 = vmul.f32 %v631, %v1126
      %v1136 = vmul.f32 %v636, %v1126
      %v1137 = vmul.f32 %v641, %v1126
      %v1138 = vmul.f32 %v646, %v1126
      %v1139 = vmul.f32 %v651, %v1126
      %v1140 = vmul.f32 %v656, %v1126
      %v1141 = vmul.f32 %v661, %v1126
      %v1142 = vmul.f32 %v666, %v1126
      %v1143 = vmul.f32 %v671, %v1126
      %v1144 = vmul.f32 %v676, %v1126
      %v1145 = vmul.f32 %v681, %v1126
      %v1146 = vmul.f32 %v686, %v1126
      %v1147 = vmul.f32 %v691, %v1126
      %v1148 = vmul.f32 %v696, %v1126
      %v1149 = vmul.f32 %v701, %v1126
      %v1150 = vmul.f32 %v706, %v1126
      %v1151 = vmul.f32 %v711, %v1126
      %v1152 = vmul.f32 %v716, %v1126
      %v1153 = vmul.f32 %v721, %v1126
      %v1154 = vmul.f32 %v726, %v1126
      %v1155 = vmul.f32 %v731, %v1126
      %v1156 = vmul.f32 %v736, %v1126
      %v1157 = vmul.f32 %v741, %v1126
      %v1158 = vmul.f32 %v746, %v1126
      %v1159 = vmul.f32 %v751, %v1126
      %v1160 = vmul.f32 %v756, %v1126
      %v1161 = vmul.f32 %v761, %v1126
      %v1162 = vmul.f32 %v766, %v1126
      %v1163 = vmul.f32 %v771, %v1126
      %v1164 = vmul.f32 %v776, %v1126
      %v1165 = vmul.f32 %v781, %v1126
      %v1166 = vmul.f32 %v786, %v1126
      %v1167 = vmul.f32 %v791, %v1126
      %v1168 = vmul.f32 %v796, %v1126
      %v1169 = vmul.f32 %v801, %v1126
      %v1170 = vmul.f32 %v806, %v1126
      %v1171 = vmul.f32 %v811, %v1126
      %v1172 = vmul.f32 %v816, %v1126
      %v1173 = vmul.f32 %v821, %v1126
      %v1174 = vmul.f32 %v826, %v1126
      %v1175 = vmul.f32 %v831, %v1126
      %v1176 = vmul.f32 %v836, %v1126
      %v1177 = vmul.f32 %v841, %v1126
      %v1178 = vmul.f32 %v846, %v1126
      %v1179 = vmul.f32 %v851, %v1126
      %v1180 = vmul.f32 %v856, %v1126
      %v1181 = vmul.f32 %v861, %v1126
      %v1182 = vmul.f32 %v866, %v1126
      %v1183 = vmul.f32 %v871, %v1126
      %v1184 = vmul.f32 %v876, %v1126
      %v1185 = vmul.f32 %v881, %v1126
      %v1186 = vmul.f32 %v886, %v1126
      %v1187 = vmul.f32 %v891, %v1126
      %v1188 = vmul.f32 %v896, %v1126
      %v1189 = vmul.f32 %v901, %v1126
      %v1190 = vmul.f32 %v906, %v1126
      %v1192 = vlaneseq
      %v1193 = vshrl.u32 %v1192, 7
      %v1194 = vsub.s32 0, %v1193
      %v1195 = vrot.slane %v1122, %v1194
      %v1197 = vadd.f32 %v1127, %v1195
      %v1198 = vadd.f32 %v1128, %v1195
      %v1199 = vadd.f32 %v1129, %v1195
      %v1200 = vadd.f32 %v1130, %v1195
      %v1201 = vadd.f32 %v1131, %v1195
      %v1202 = vadd.f32 %v1132, %v1195
      %v1203 = vadd.f32 %v1133, %v1195
      %v1204 = vadd.f32 %v1134, %v1195
      %v1205 = vadd.f32 %v1135, %v1195
      %v1206 = vadd.f32 %v1136, %v1195
      %v1207 = vadd.f32 %v1137, %v1195
      %v1208 = vadd.f32 %v1138, %v1195
      %v1209 = vadd.f32 %v1139, %v1195
      %v1210 = vadd.f32 %v1140, %v1195
      %v1211 = vadd.f32 %v1141, %v1195
      %v1212 = vadd.f32 %v1142, %v1195
      %v1213 = vadd.f32 %v1143, %v1195
      %v1214 = vadd.f32 %v1144, %v1195
      %v1215 = vadd.f32 %v1145, %v1195
      %v1216 = vadd.f32 %v1146, %v1195
      %v1217 = vadd.f32 %v1147, %v1195
      %v1218 = vadd.f32 %v1148, %v1195
      %v1219 = vadd.f32 %v1149, %v1195
      %v1220 = vadd.f32 %v1150, %v1195
      %v1221 = vadd.f32 %v1151, %v1195
      %v1222 = vadd.f32 %v1152, %v1195
      %v1223 = vadd.f32 %v1153, %v1195
      %v1224 = vadd.f32 %v1154, %v1195
      %v1225 = vadd.f32 %v1155, %v1195
      %v1226 = vadd.f32 %v1156, %v1195
      %v1227 = vadd.f32 %v1157, %v1195
      %v1228 = vadd.f32 %v1158, %v1195
      %v1229 = vadd.f32 %v1159, %v1195
      %v1230 = vadd.f32 %v1160, %v1195
      %v1231 = vadd.f32 %v1161, %v1195
      %v1232 = vadd.f32 %v1162, %v1195
      %v1233 = vadd.f32 %v1163, %v1195
      %v1234 = vadd.f32 %v1164, %v1195
      %v1235 = vadd.f32 %v1165, %v1195
      %v1236 = vadd.f32 %v1166, %v1195
      %v1237 = vadd.f32 %v1167, %v1195
      %v1238 = vadd.f32 %v1168, %v1195
      %v1239 = vadd.f32 %v1169, %v1195
      %v1240 = vadd.f32 %v1170, %v1195
      %v1241 = vadd.f32 %v1171, %v1195
      %v1242 = vadd.f32 %v1172, %v1195
      %v1243 = vadd.f32 %v1173, %v1195
      %v1244 = vadd.f32 %v1174, %v1195
      %v1245 = vadd.f32 %v1175, %v1195
      %v1246 = vadd.f32 %v1176, %v1195
      %v1247 = vadd.f32 %v1177, %v1195
      %v1248 = vadd.f32 %v1178, %v1195
      %v1249 = vadd.f32 %v1179, %v1195
      %v1250 = vadd.f32 %v1180, %v1195
      %v1251 = vadd.f32 %v1181, %v1195
      %v1252 = vadd.f32 %v1182, %v1195
      %v1253 = vadd.f32 %v1183, %v1195
      %v1254 = vadd.f32 %v1184, %v1195
      %v1255 = vadd.f32 %v1185, %v1195
      %v1256 = vadd.f32 %v1186, %v1195
      %v1257 = vadd.f32 %v1187, %v1195
      %v1258 = vadd.f32 %v1188, %v1195
      %v1259 = vadd.f32 %v1189, %v1195
      %v1260 = vadd.f32 %v1190, %v1195
      %v1261 = vmax.f32 %v1197, 0.0
      %v1262 = vmax.f32 %v1198, 0.0
      %v1263 = vmax.f32 %v1199, 0.0
      %v1264 = vmax.f32 %v1200, 0.0
      %v1265 = vmax.f32 %v1201, 0.0
      %v1266 = vmax.f32 %v1202, 0.0
      %v1267 = vmax.f32 %v1203, 0.0
      %v1268 = vmax.f32 %v1204, 0.0
      %v1269 = vmax.f32 %v1205, 0.0
      %v1270 = vmax.f32 %v1206, 0.0
      %v1271 = vmax.f32 %v1207, 0.0
      %v1272 = vmax.f32 %v1208, 0.0
      %v1273 = vmax.f32 %v1209, 0.0
      %v1274 = vmax.f32 %v1210, 0.0
      %v1275 = vmax.f32 %v1211, 0.0
      %v1276 = vmax.f32 %v1212, 0.0
      %v1277 = vmax.f32 %v1213, 0.0
      %v1278 = vmax.f32 %v1214, 0.0
      %v1279 = vmax.f32 %v1215, 0.0
      %v1280 = vmax.f32 %v1216, 0.0
      %v1281 = vmax.f32 %v1217, 0.0
      %v1282 = vmax.f32 %v1218, 0.0
      %v1283 = vmax.f32 %v1219, 0.0
      %v1284 = vmax.f32 %v1220, 0.0
      %v1285 = vmax.f32 %v1221, 0.0
      %v1286 = vmax.f32 %v1222, 0.0
      %v1287 = vmax.f32 %v1223, 0.0
      %v1288 = vmax.f32 %v1224, 0.0
      %v1289 = vmax.f32 %v1225, 0.0
      %v1290 = vmax.f32 %v1226, 0.0
      %v1291 = vmax.f32 %v1227, 0.0
      %v1292 = vmax.f32 %v1228, 0.0
      %v1293 = vmax.f32 %v1229, 0.0
      %v1294 = vmax.f32 %v1230, 0.0
      %v1295 = vmax.f32 %v1231, 0.0
      %v1296 = vmax.f32 %v1232, 0.0
      %v1297 = vmax.f32 %v1233, 0.0
      %v1298 = vmax.f32 %v1234, 0.0
      %v1299 = vmax.f32 %v1235, 0.0
      %v1300 = vmax.f32 %v1236, 0.0
      %v1301 = vmax.f32 %v1237, 0.0
      %v1302 = vmax.f32 %v1238, 0.0
      %v1303 = vmax.f32 %v1239, 0.0
      %v1304 = vmax.f32 %v1240, 0.0
      %v1305 = vmax.f32 %v1241, 0.0
      %v1306 = vmax.f32 %v1242, 0.0
      %v1307 = vmax.f32 %v1243, 0.0
      %v1308 = vmax.f32 %v1244, 0.0
      %v1309 = vmax.f32 %v1245, 0.0
      %v1310 = vmax.f32 %v1246, 0.0
      %v1311 = vmax.f32 %v1247, 0.0
      %v1312 = vmax.f32 %v1248, 0.0
      %v1313 = vmax.f32 %v1249, 0.0
      %v1314 = vmax.f32 %v1250, 0.0
      %v1315 = vmax.f32 %v1251, 0.0
      %v1316 = vmax.f32 %v1252, 0.0
      %v1317 = vmax.f32 %v1253, 0.0
      %v1318 = vmax.f32 %v1254, 0.0
      %v1319 = vmax.f32 %v1255, 0.0
      %v1320 = vmax.f32 %v1256, 0.0
      %v1321 = vmax.f32 %v1257, 0.0
      %v1322 = vmax.f32 %v1258, 0.0
      %v1323 = vmax.f32 %v1259, 0.0
      %v1324 = vmax.f32 %v1260, 0.0
      %p1325 = scmp.eq.s32.totalorder %s16, 0
      // Predicated region
      $region41: #{ff_module_forward.3} parent=39 // pred_check
        %p1326 = pneg %p1325
      $region42: #{ff_module_forward.3} parent=39 // pred_check_branch
        %1328 = sbr.rel (%p1326) target = $region44
      $region43: #{ff_module_forward.3} parent=39 // pred_region
        %v1329 = vld [vmem:[%s4] sm:$0xff]
        %v1330 = vld [vmem:[%s4 + $0x8] sm:$0xff]
        %v1331 = vld [vmem:[%s4 + $0x10] sm:$0xff]
        %v1332 = vld [vmem:[%s4 + $0x18] sm:$0xff]
        %v1333 = vld [vmem:[%s4 + $0x20] sm:$0xff]
        %v1334 = vld [vmem:[%s4 + $0x28] sm:$0xff]
        %v1335 = vld [vmem:[%s4 + $0x30] sm:$0xff]
        %v1336 = vld [vmem:[%s4 + $0x38] sm:$0xff]
        %v1337 = vld [vmem:[%s4 + $0x40] sm:$0xff]
        %v1338 = vld [vmem:[%s4 + $0x48] sm:$0xff]
        %v1339 = vld [vmem:[%s4 + $0x50] sm:$0xff]
        %v1340 = vld [vmem:[%s4 + $0x58] sm:$0xff]
        %v1341 = vld [vmem:[%s4 + $0x60] sm:$0xff]
        %v1342 = vld [vmem:[%s4 + $0x68] sm:$0xff]
        %v1343 = vld [vmem:[%s4 + $0x70] sm:$0xff]
        %v1344 = vld [vmem:[%s4 + $0x78] sm:$0xff]
        %v1345 = vld [vmem:[%s4 + $0x80] sm:$0xff]
        %v1346 = vld [vmem:[%s4 + $0x88] sm:$0xff]
        %v1347 = vld [vmem:[%s4 + $0x90] sm:$0xff]
        %v1348 = vld [vmem:[%s4 + $0x98] sm:$0xff]
        %v1349 = vld [vmem:[%s4 + $0xa0] sm:$0xff]
        %v1350 = vld [vmem:[%s4 + $0xa8] sm:$0xff]
        %v1351 = vld [vmem:[%s4 + $0xb0] sm:$0xff]
        %v1352 = vld [vmem:[%s4 + $0xb8] sm:$0xff]
        %v1353 = vld [vmem:[%s4 + $0xc0] sm:$0xff]
        %v1354 = vld [vmem:[%s4 + $0xc8] sm:$0xff]
        %v1355 = vld [vmem:[%s4 + $0xd0] sm:$0xff]
        %v1356 = vld [vmem:[%s4 + $0xd8] sm:$0xff]
        %v1357 = vld [vmem:[%s4 + $0xe0] sm:$0xff]
        %v1358 = vld [vmem:[%s4 + $0xe8] sm:$0xff]
        %v1359 = vld [vmem:[%s4 + $0xf0] sm:$0xff]
        %v1360 = vld [vmem:[%s4 + $0xf8] sm:$0xff]
        %v1361 = vld [vmem:[%s4 + $0x100] sm:$0xff]
        %v1362 = vld [vmem:[%s4 + $0x108] sm:$0xff]
        %v1363 = vld [vmem:[%s4 + $0x110] sm:$0xff]
        %v1364 = vld [vmem:[%s4 + $0x118] sm:$0xff]
        %v1365 = vld [vmem:[%s4 + $0x120] sm:$0xff]
        %v1366 = vld [vmem:[%s4 + $0x128] sm:$0xff]
        %v1367 = vld [vmem:[%s4 + $0x130] sm:$0xff]
        %v1368 = vld [vmem:[%s4 + $0x138] sm:$0xff]
        %v1369 = vld [vmem:[%s4 + $0x140] sm:$0xff]
        %v1370 = vld [vmem:[%s4 + $0x148] sm:$0xff]
        %v1371 = vld [vmem:[%s4 + $0x150] sm:$0xff]
        %v1372 = vld [vmem:[%s4 + $0x158] sm:$0xff]
        %v1373 = vld [vmem:[%s4 + $0x160] sm:$0xff]
        %v1374 = vld [vmem:[%s4 + $0x168] sm:$0xff]
        %v1375 = vld [vmem:[%s4 + $0x170] sm:$0xff]
        %v1376 = vld [vmem:[%s4 + $0x178] sm:$0xff]
        %v1377 = vld [vmem:[%s4 + $0x180] sm:$0xff]
        %v1378 = vld [vmem:[%s4 + $0x188] sm:$0xff]
        %v1379 = vld [vmem:[%s4 + $0x190] sm:$0xff]
        %v1380 = vld [vmem:[%s4 + $0x198] sm:$0xff]
        %v1381 = vld [vmem:[%s4 + $0x1a0] sm:$0xff]
        %v1382 = vld [vmem:[%s4 + $0x1a8] sm:$0xff]
        %v1383 = vld [vmem:[%s4 + $0x1b0] sm:$0xff]
        %v1384 = vld [vmem:[%s4 + $0x1b8] sm:$0xff]
        %v1385 = vld [vmem:[%s4 + $0x1c0] sm:$0xff]
        %v1386 = vld [vmem:[%s4 + $0x1c8] sm:$0xff]
        %v1387 = vld [vmem:[%s4 + $0x1d0] sm:$0xff]
        %v1388 = vld [vmem:[%s4 + $0x1d8] sm:$0xff]
        %v1389 = vld [vmem:[%s4 + $0x1e0] sm:$0xff]
        %v1390 = vld [vmem:[%s4 + $0x1e8] sm:$0xff]
        %v1391 = vld [vmem:[%s4 + $0x1f0] sm:$0xff]
        %v1392 = vld [vmem:[%s4 + $0x1f8] sm:$0xff]
        %v1393 = vmul.f32 %v1261, %v1329
        %v1394 = vmul.f32 %v1262, %v1330
        %v1395 = vmul.f32 %v1263, %v1331
        %v1396 = vmul.f32 %v1264, %v1332
        %v1397 = vmul.f32 %v1265, %v1333
        %v1398 = vmul.f32 %v1266, %v1334
        %v1399 = vmul.f32 %v1267, %v1335
        %v1400 = vmul.f32 %v1268, %v1336
        %v1401 = vmul.f32 %v1269, %v1337
        %v1402 = vmul.f32 %v1270, %v1338
        %v1403 = vmul.f32 %v1271, %v1339
        %v1404 = vmul.f32 %v1272, %v1340
        %v1405 = vmul.f32 %v1273, %v1341
        %v1406 = vmul.f32 %v1274, %v1342
        %v1407 = vmul.f32 %v1275, %v1343
        %v1408 = vmul.f32 %v1276, %v1344
        %v1409 = vmul.f32 %v1277, %v1345
        %v1410 = vmul.f32 %v1278, %v1346
        %v1411 = vmul.f32 %v1279, %v1347
        %v1412 = vmul.f32 %v1280, %v1348
        %v1413 = vmul.f32 %v1281, %v1349
        %v1414 = vmul.f32 %v1282, %v1350
        %v1415 = vmul.f32 %v1283, %v1351
        %v1416 = vmul.f32 %v1284, %v1352
        %v1417 = vmul.f32 %v1285, %v1353
        %v1418 = vmul.f32 %v1286, %v1354
        %v1419 = vmul.f32 %v1287, %v1355
        %v1420 = vmul.f32 %v1288, %v1356
        %v1421 = vmul.f32 %v1289, %v1357
        %v1422 = vmul.f32 %v1290, %v1358
        %v1423 = vmul.f32 %v1291, %v1359
        %v1424 = vmul.f32 %v1292, %v1360
        %v1425 = vmul.f32 %v1293, %v1361
        %v1426 = vmul.f32 %v1294, %v1362
        %v1427 = vmul.f32 %v1295, %v1363
        %v1428 = vmul.f32 %v1296, %v1364
        %v1429 = vmul.f32 %v1297, %v1365
        %v1430 = vmul.f32 %v1298, %v1366
        %v1431 = vmul.f32 %v1299, %v1367
        %v1432 = vmul.f32 %v1300, %v1368
        %v1433 = vmul.f32 %v1301, %v1369
        %v1434 = vmul.f32 %v1302, %v1370
        %v1435 = vmul.f32 %v1303, %v1371
        %v1436 = vmul.f32 %v1304, %v1372
        %v1437 = vmul.f32 %v1305, %v1373
        %v1438 = vmul.f32 %v1306, %v1374
        %v1439 = vmul.f32 %v1307, %v1375
        %v1440 = vmul.f32 %v1308, %v1376
        %v1441 = vmul.f32 %v1309, %v1377
        %v1442 = vmul.f32 %v1310, %v1378
        %v1443 = vmul.f32 %v1311, %v1379
        %v1444 = vmul.f32 %v1312, %v1380
        %v1445 = vmul.f32 %v1313, %v1381
        %v1446 = vmul.f32 %v1314, %v1382
        %v1447 = vmul.f32 %v1315, %v1383
        %v1448 = vmul.f32 %v1316, %v1384
        %v1449 = vmul.f32 %v1317, %v1385
        %v1450 = vmul.f32 %v1318, %v1386
        %v1451 = vmul.f32 %v1319, %v1387
        %v1452 = vmul.f32 %v1320, %v1388
        %v1453 = vmul.f32 %v1321, %v1389
        %v1454 = vmul.f32 %v1322, %v1390
        %v1455 = vmul.f32 %v1323, %v1391
        %v1456 = vmul.f32 %v1324, %v1392
        %1457 = vst [vmem:[%s5] sm:$0xff] %v1393
        %1458 = vst [vmem:[%s5 + $0x8] sm:$0xff] %v1394
        %1459 = vst [vmem:[%s5 + $0x10] sm:$0xff] %v1395
        %1460 = vst [vmem:[%s5 + $0x18] sm:$0xff] %v1396
        %1461 = vst [vmem:[%s5 + $0x20] sm:$0xff] %v1397
        %1462 = vst [vmem:[%s5 + $0x28] sm:$0xff] %v1398
        %1463 = vst [vmem:[%s5 + $0x30] sm:$0xff] %v1399
        %1464 = vst [vmem:[%s5 + $0x38] sm:$0xff] %v1400
        %1465 = vst [vmem:[%s5 + $0x40] sm:$0xff] %v1401
        %1466 = vst [vmem:[%s5 + $0x48] sm:$0xff] %v1402
        %1467 = vst [vmem:[%s5 + $0x50] sm:$0xff] %v1403
        %1468 = vst [vmem:[%s5 + $0x58] sm:$0xff] %v1404
        %1469 = vst [vmem:[%s5 + $0x60] sm:$0xff] %v1405
        %1470 = vst [vmem:[%s5 + $0x68] sm:$0xff] %v1406
        %1471 = vst [vmem:[%s5 + $0x70] sm:$0xff] %v1407
        %1472 = vst [vmem:[%s5 + $0x78] sm:$0xff] %v1408
        %1473 = vst [vmem:[%s5 + $0x80] sm:$0xff] %v1409
        %1474 = vst [vmem:[%s5 + $0x88] sm:$0xff] %v1410
        %1475 = vst [vmem:[%s5 + $0x90] sm:$0xff] %v1411
        %1476 = vst [vmem:[%s5 + $0x98] sm:$0xff] %v1412
        %1477 = vst [vmem:[%s5 + $0xa0] sm:$0xff] %v1413
        %1478 = vst [vmem:[%s5 + $0xa8] sm:$0xff] %v1414
        %1479 = vst [vmem:[%s5 + $0xb0] sm:$0xff] %v1415
        %1480 = vst [vmem:[%s5 + $0xb8] sm:$0xff] %v1416
        %1481 = vst [vmem:[%s5 + $0xc0] sm:$0xff] %v1417
        %1482 = vst [vmem:[%s5 + $0xc8] sm:$0xff] %v1418
        %1483 = vst [vmem:[%s5 + $0xd0] sm:$0xff] %v1419
        %1484 = vst [vmem:[%s5 + $0xd8] sm:$0xff] %v1420
        %1485 = vst [vmem:[%s5 + $0xe0] sm:$0xff] %v1421
        %1486 = vst [vmem:[%s5 + $0xe8] sm:$0xff] %v1422
        %1487 = vst [vmem:[%s5 + $0xf0] sm:$0xff] %v1423
        %1488 = vst [vmem:[%s5 + $0xf8] sm:$0xff] %v1424
        %1489 = vst [vmem:[%s5 + $0x100] sm:$0xff] %v1425
        %1490 = vst [vmem:[%s5 + $0x108] sm:$0xff] %v1426
        %1491 = vst [vmem:[%s5 + $0x110] sm:$0xff] %v1427
        %1492 = vst [vmem:[%s5 + $0x118] sm:$0xff] %v1428
        %1493 = vst [vmem:[%s5 + $0x120] sm:$0xff] %v1429
        %1494 = vst [vmem:[%s5 + $0x128] sm:$0xff] %v1430
        %1495 = vst [vmem:[%s5 + $0x130] sm:$0xff] %v1431
        %1496 = vst [vmem:[%s5 + $0x138] sm:$0xff] %v1432
        %1497 = vst [vmem:[%s5 + $0x140] sm:$0xff] %v1433
        %1498 = vst [vmem:[%s5 + $0x148] sm:$0xff] %v1434
        %1499 = vst [vmem:[%s5 + $0x150] sm:$0xff] %v1435
        %1500 = vst [vmem:[%s5 + $0x158] sm:$0xff] %v1436
        %1501 = vst [vmem:[%s5 + $0x160] sm:$0xff] %v1437
        %1502 = vst [vmem:[%s5 + $0x168] sm:$0xff] %v1438
        %1503 = vst [vmem:[%s5 + $0x170] sm:$0xff] %v1439
        %1504 = vst [vmem:[%s5 + $0x178] sm:$0xff] %v1440
        %1505 = vst [vmem:[%s5 + $0x180] sm:$0xff] %v1441
        %1506 = vst [vmem:[%s5 + $0x188] sm:$0xff] %v1442
        %1507 = vst [vmem:[%s5 + $0x190] sm:$0xff] %v1443
        %1508 = vst [vmem:[%s5 + $0x198] sm:$0xff] %v1444
        %1509 = vst [vmem:[%s5 + $0x1a0] sm:$0xff] %v1445
        %1510 = vst [vmem:[%s5 + $0x1a8] sm:$0xff] %v1446
        %1511 = vst [vmem:[%s5 + $0x1b0] sm:$0xff] %v1447
        %1512 = vst [vmem:[%s5 + $0x1b8] sm:$0xff] %v1448
        %1513 = vst [vmem:[%s5 + $0x1c0] sm:$0xff] %v1449
        %1514 = vst [vmem:[%s5 + $0x1c8] sm:$0xff] %v1450
        %1515 = vst [vmem:[%s5 + $0x1d0] sm:$0xff] %v1451
        %1516 = vst [vmem:[%s5 + $0x1d8] sm:$0xff] %v1452
        %1517 = vst [vmem:[%s5 + $0x1e0] sm:$0xff] %v1453
        %1518 = vst [vmem:[%s5 + $0x1e8] sm:$0xff] %v1454
        %1519 = vst [vmem:[%s5 + $0x1f0] sm:$0xff] %v1455
        %1520 = vst [vmem:[%s5 + $0x1f8] sm:$0xff] %v1456
      $region44: #{ff_module_forward.3} parent=39 // pred_fallthru
        _
      %p1521 = scmp.eq.s32.totalorder %s16, 1
      // Predicated region
      $region45: #{ff_module_forward.3} parent=39 // pred_check
        %p1522 = pneg %p1521
      $region46: #{ff_module_forward.3} parent=39 // pred_check_branch
        %1524 = sbr.rel (%p1522) target = $region48
      $region47: #{ff_module_forward.3} parent=39 // pred_region
        %v1525 = vld [vmem:[%s5] sm:$0xff]
        %v1526 = vld [vmem:[%s5 + $0x8] sm:$0xff]
        %v1527 = vld [vmem:[%s5 + $0x10] sm:$0xff]
        %v1528 = vld [vmem:[%s5 + $0x18] sm:$0xff]
        %v1529 = vld [vmem:[%s5 + $0x20] sm:$0xff]
        %v1530 = vld [vmem:[%s5 + $0x28] sm:$0xff]
        %v1531 = vld [vmem:[%s5 + $0x30] sm:$0xff]
        %v1532 = vld [vmem:[%s5 + $0x38] sm:$0xff]
        %v1533 = vld [vmem:[%s5 + $0x40] sm:$0xff]
        %v1534 = vld [vmem:[%s5 + $0x48] sm:$0xff]
        %v1535 = vld [vmem:[%s5 + $0x50] sm:$0xff]
        %v1536 = vld [vmem:[%s5 + $0x58] sm:$0xff]
        %v1537 = vld [vmem:[%s5 + $0x60] sm:$0xff]
        %v1538 = vld [vmem:[%s5 + $0x68] sm:$0xff]
        %v1539 = vld [vmem:[%s5 + $0x70] sm:$0xff]
        %v1540 = vld [vmem:[%s5 + $0x78] sm:$0xff]
        %v1541 = vld [vmem:[%s5 + $0x80] sm:$0xff]
        %v1542 = vld [vmem:[%s5 + $0x88] sm:$0xff]
        %v1543 = vld [vmem:[%s5 + $0x90] sm:$0xff]
        %v1544 = vld [vmem:[%s5 + $0x98] sm:$0xff]
        %v1545 = vld [vmem:[%s5 + $0xa0] sm:$0xff]
        %v1546 = vld [vmem:[%s5 + $0xa8] sm:$0xff]
        %v1547 = vld [vmem:[%s5 + $0xb0] sm:$0xff]
        %v1548 = vld [vmem:[%s5 + $0xb8] sm:$0xff]
        %v1549 = vld [vmem:[%s5 + $0xc0] sm:$0xff]
        %v1550 = vld [vmem:[%s5 + $0xc8] sm:$0xff]
        %v1551 = vld [vmem:[%s5 + $0xd0] sm:$0xff]
        %v1552 = vld [vmem:[%s5 + $0xd8] sm:$0xff]
        %v1553 = vld [vmem:[%s5 + $0xe0] sm:$0xff]
        %v1554 = vld [vmem:[%s5 + $0xe8] sm:$0xff]
        %v1555 = vld [vmem:[%s5 + $0xf0] sm:$0xff]
        %v1556 = vld [vmem:[%s5 + $0xf8] sm:$0xff]
        %v1557 = vld [vmem:[%s5 + $0x100] sm:$0xff]
        %v1558 = vld [vmem:[%s5 + $0x108] sm:$0xff]
        %v1559 = vld [vmem:[%s5 + $0x110] sm:$0xff]
        %v1560 = vld [vmem:[%s5 + $0x118] sm:$0xff]
        %v1561 = vld [vmem:[%s5 + $0x120] sm:$0xff]
        %v1562 = vld [vmem:[%s5 + $0x128] sm:$0xff]
        %v1563 = vld [vmem:[%s5 + $0x130] sm:$0xff]
        %v1564 = vld [vmem:[%s5 + $0x138] sm:$0xff]
        %v1565 = vld [vmem:[%s5 + $0x140] sm:$0xff]
        %v1566 = vld [vmem:[%s5 + $0x148] sm:$0xff]
        %v1567 = vld [vmem:[%s5 + $0x150] sm:$0xff]
        %v1568 = vld [vmem:[%s5 + $0x158] sm:$0xff]
        %v1569 = vld [vmem:[%s5 + $0x160] sm:$0xff]
        %v1570 = vld [vmem:[%s5 + $0x168] sm:$0xff]
        %v1571 = vld [vmem:[%s5 + $0x170] sm:$0xff]
        %v1572 = vld [vmem:[%s5 + $0x178] sm:$0xff]
        %v1573 = vld [vmem:[%s5 + $0x180] sm:$0xff]
        %v1574 = vld [vmem:[%s5 + $0x188] sm:$0xff]
        %v1575 = vld [vmem:[%s5 + $0x190] sm:$0xff]
        %v1576 = vld [vmem:[%s5 + $0x198] sm:$0xff]
        %v1577 = vld [vmem:[%s5 + $0x1a0] sm:$0xff]
        %v1578 = vld [vmem:[%s5 + $0x1a8] sm:$0xff]
        %v1579 = vld [vmem:[%s5 + $0x1b0] sm:$0xff]
        %v1580 = vld [vmem:[%s5 + $0x1b8] sm:$0xff]
        %v1581 = vld [vmem:[%s5 + $0x1c0] sm:$0xff]
        %v1582 = vld [vmem:[%s5 + $0x1c8] sm:$0xff]
        %v1583 = vld [vmem:[%s5 + $0x1d0] sm:$0xff]
        %v1584 = vld [vmem:[%s5 + $0x1d8] sm:$0xff]
        %v1585 = vld [vmem:[%s5 + $0x1e0] sm:$0xff]
        %v1586 = vld [vmem:[%s5 + $0x1e8] sm:$0xff]
        %v1587 = vld [vmem:[%s5 + $0x1f0] sm:$0xff]
        %v1588 = vld [vmem:[%s5 + $0x1f8] sm:$0xff]
        %v1589 = vadd.f32 %v1525, %v1261
        %v1590 = vadd.f32 %v1526, %v1262
        %v1591 = vadd.f32 %v1527, %v1263
        %v1592 = vadd.f32 %v1528, %v1264
        %v1593 = vadd.f32 %v1529, %v1265
        %v1594 = vadd.f32 %v1530, %v1266
        %v1595 = vadd.f32 %v1531, %v1267
        %v1596 = vadd.f32 %v1532, %v1268
        %v1597 = vadd.f32 %v1533, %v1269
        %v1598 = vadd.f32 %v1534, %v1270
        %v1599 = vadd.f32 %v1535, %v1271
        %v1600 = vadd.f32 %v1536, %v1272
        %v1601 = vadd.f32 %v1537, %v1273
        %v1602 = vadd.f32 %v1538, %v1274
        %v1603 = vadd.f32 %v1539, %v1275
        %v1604 = vadd.f32 %v1540, %v1276
        %v1605 = vadd.f32 %v1541, %v1277
        %v1606 = vadd.f32 %v1542, %v1278
        %v1607 = vadd.f32 %v1543, %v1279
        %v1608 = vadd.f32 %v1544, %v1280
        %v1609 = vadd.f32 %v1545, %v1281
        %v1610 = vadd.f32 %v1546, %v1282
        %v1611 = vadd.f32 %v1547, %v1283
        %v1612 = vadd.f32 %v1548, %v1284
        %v1613 = vadd.f32 %v1549, %v1285
        %v1614 = vadd.f32 %v1550, %v1286
        %v1615 = vadd.f32 %v1551, %v1287
        %v1616 = vadd.f32 %v1552, %v1288
        %v1617 = vadd.f32 %v1553, %v1289
        %v1618 = vadd.f32 %v1554, %v1290
        %v1619 = vadd.f32 %v1555, %v1291
        %v1620 = vadd.f32 %v1556, %v1292
        %v1621 = vadd.f32 %v1557, %v1293
        %v1622 = vadd.f32 %v1558, %v1294
        %v1623 = vadd.f32 %v1559, %v1295
        %v1624 = vadd.f32 %v1560, %v1296
        %v1625 = vadd.f32 %v1561, %v1297
        %v1626 = vadd.f32 %v1562, %v1298
        %v1627 = vadd.f32 %v1563, %v1299
        %v1628 = vadd.f32 %v1564, %v1300
        %v1629 = vadd.f32 %v1565, %v1301
        %v1630 = vadd.f32 %v1566, %v1302
        %v1631 = vadd.f32 %v1567, %v1303
        %v1632 = vadd.f32 %v1568, %v1304
        %v1633 = vadd.f32 %v1569, %v1305
        %v1634 = vadd.f32 %v1570, %v1306
        %v1635 = vadd.f32 %v1571, %v1307
        %v1636 = vadd.f32 %v1572, %v1308
        %v1637 = vadd.f32 %v1573, %v1309
        %v1638 = vadd.f32 %v1574, %v1310
        %v1639 = vadd.f32 %v1575, %v1311
        %v1640 = vadd.f32 %v1576, %v1312
        %v1641 = vadd.f32 %v1577, %v1313
        %v1642 = vadd.f32 %v1578, %v1314
        %v1643 = vadd.f32 %v1579, %v1315
        %v1644 = vadd.f32 %v1580, %v1316
        %v1645 = vadd.f32 %v1581, %v1317
        %v1646 = vadd.f32 %v1582, %v1318
        %v1647 = vadd.f32 %v1583, %v1319
        %v1648 = vadd.f32 %v1584, %v1320
        %v1649 = vadd.f32 %v1585, %v1321
        %v1650 = vadd.f32 %v1586, %v1322
        %v1651 = vadd.f32 %v1587, %v1323
        %v1652 = vadd.f32 %v1588, %v1324
        %1653 = vst [vmem:[%s5] sm:$0xff] %v1589
        %1654 = vst [vmem:[%s5 + $0x8] sm:$0xff] %v1590
        %1655 = vst [vmem:[%s5 + $0x10] sm:$0xff] %v1591
        %1656 = vst [vmem:[%s5 + $0x18] sm:$0xff] %v1592
        %1657 = vst [vmem:[%s5 + $0x20] sm:$0xff] %v1593
        %1658 = vst [vmem:[%s5 + $0x28] sm:$0xff] %v1594
        %1659 = vst [vmem:[%s5 + $0x30] sm:$0xff] %v1595
        %1660 = vst [vmem:[%s5 + $0x38] sm:$0xff] %v1596
        %1661 = vst [vmem:[%s5 + $0x40] sm:$0xff] %v1597
        %1662 = vst [vmem:[%s5 + $0x48] sm:$0xff] %v1598
        %1663 = vst [vmem:[%s5 + $0x50] sm:$0xff] %v1599
        %1664 = vst [vmem:[%s5 + $0x58] sm:$0xff] %v1600
        %1665 = vst [vmem:[%s5 + $0x60] sm:$0xff] %v1601
        %1666 = vst [vmem:[%s5 + $0x68] sm:$0xff] %v1602
        %1667 = vst [vmem:[%s5 + $0x70] sm:$0xff] %v1603
        %1668 = vst [vmem:[%s5 + $0x78] sm:$0xff] %v1604
        %1669 = vst [vmem:[%s5 + $0x80] sm:$0xff] %v1605
        %1670 = vst [vmem:[%s5 + $0x88] sm:$0xff] %v1606
        %1671 = vst [vmem:[%s5 + $0x90] sm:$0xff] %v1607
        %1672 = vst [vmem:[%s5 + $0x98] sm:$0xff] %v1608
        %1673 = vst [vmem:[%s5 + $0xa0] sm:$0xff] %v1609
        %1674 = vst [vmem:[%s5 + $0xa8] sm:$0xff] %v1610
        %1675 = vst [vmem:[%s5 + $0xb0] sm:$0xff] %v1611
        %1676 = vst [vmem:[%s5 + $0xb8] sm:$0xff] %v1612
        %1677 = vst [vmem:[%s5 + $0xc0] sm:$0xff] %v1613
        %1678 = vst [vmem:[%s5 + $0xc8] sm:$0xff] %v1614
        %1679 = vst [vmem:[%s5 + $0xd0] sm:$0xff] %v1615
        %1680 = vst [vmem:[%s5 + $0xd8] sm:$0xff] %v1616
        %1681 = vst [vmem:[%s5 + $0xe0] sm:$0xff] %v1617
        %1682 = vst [vmem:[%s5 + $0xe8] sm:$0xff] %v1618
        %1683 = vst [vmem:[%s5 + $0xf0] sm:$0xff] %v1619
        %1684 = vst [vmem:[%s5 + $0xf8] sm:$0xff] %v1620
        %1685 = vst [vmem:[%s5 + $0x100] sm:$0xff] %v1621
        %1686 = vst [vmem:[%s5 + $0x108] sm:$0xff] %v1622
        %1687 = vst [vmem:[%s5 + $0x110] sm:$0xff] %v1623
        %1688 = vst [vmem:[%s5 + $0x118] sm:$0xff] %v1624
        %1689 = vst [vmem:[%s5 + $0x120] sm:$0xff] %v1625
        %1690 = vst [vmem:[%s5 + $0x128] sm:$0xff] %v1626
        %1691 = vst [vmem:[%s5 + $0x130] sm:$0xff] %v1627
        %1692 = vst [vmem:[%s5 + $0x138] sm:$0xff] %v1628
        %1693 = vst [vmem:[%s5 + $0x140] sm:$0xff] %v1629
        %1694 = vst [vmem:[%s5 + $0x148] sm:$0xff] %v1630
        %1695 = vst [vmem:[%s5 + $0x150] sm:$0xff] %v1631
        %1696 = vst [vmem:[%s5 + $0x158] sm:$0xff] %v1632
        %1697 = vst [vmem:[%s5 + $0x160] sm:$0xff] %v1633
        %1698 = vst [vmem:[%s5 + $0x168] sm:$0xff] %v1634
        %1699 = vst [vmem:[%s5 + $0x170] sm:$0xff] %v1635
        %1700 = vst [vmem:[%s5 + $0x178] sm:$0xff] %v1636
        %1701 = vst [vmem:[%s5 + $0x180] sm:$0xff] %v1637
        %1702 = vst [vmem:[%s5 + $0x188] sm:$0xff] %v1638
        %1703 = vst [vmem:[%s5 + $0x190] sm:$0xff] %v1639
        %1704 = vst [vmem:[%s5 + $0x198] sm:$0xff] %v1640
        %1705 = vst [vmem:[%s5 + $0x1a0] sm:$0xff] %v1641
        %1706 = vst [vmem:[%s5 + $0x1a8] sm:$0xff] %v1642
        %1707 = vst [vmem:[%s5 + $0x1b0] sm:$0xff] %v1643
        %1708 = vst [vmem:[%s5 + $0x1b8] sm:$0xff] %v1644
        %1709 = vst [vmem:[%s5 + $0x1c0] sm:$0xff] %v1645
        %1710 = vst [vmem:[%s5 + $0x1c8] sm:$0xff] %v1646
        %1711 = vst [vmem:[%s5 + $0x1d0] sm:$0xff] %v1647
        %1712 = vst [vmem:[%s5 + $0x1d8] sm:$0xff] %v1648
        %1713 = vst [vmem:[%s5 + $0x1e0] sm:$0xff] %v1649
        %1714 = vst [vmem:[%s5 + $0x1e8] sm:$0xff] %v1650
        %1715 = vst [vmem:[%s5 + $0x1f0] sm:$0xff] %v1651
        %1716 = vst [vmem:[%s5 + $0x1f8] sm:$0xff] %v1652
      $region48: #{ff_module_forward.3} parent=39 // pred_fallthru
        _
      // Predicated region
      $region49: #{ff_module_forward.3} parent=39 // pred_check
        %p1717 = pneg %p154
      $region50: #{ff_module_forward.3} parent=39 // pred_check_branch
        %1719 = sbr.rel (%p1717) target = $region52
      $region51: #{ff_module_forward.3} parent=39 // pred_region
        _
      $region52: #{ff_module_forward.3} parent=39 // pred_fallthru
        _
      // Predicated region
      $region53: #{ff_module_forward.3} parent=39 // pred_check
        %p1720 = pneg %p154
      $region54: #{ff_module_forward.3} parent=39 // pred_check_branch
        %1722 = sbr.rel (%p1720) target = $region56
      $region55: #{ff_module_forward.3} parent=39 // pred_region
        _
      $region56: #{ff_module_forward.3} parent=39 // pred_fallthru
        _
    $region40: #{ff_module_forward.3} parent=5 // pred_fallthru
      _
    %p1723 = scmp.le.s32.totalorder 2, %s11
    // Predicated region
    $region57: #{ff_module_forward.3} parent=5 // pred_check
      %p1724 = pneg %p1723
    $region58: #{ff_module_forward.3} parent=5 // pred_check_branch
      %1726 = sbr.rel (%p1724) target = $region60
    $region59: #{ff_module_forward.3} parent=5 // pred_region
      %s1727 = ssub.s32 %s11, 2
    $region60: #{ff_module_forward.3} parent=5 // pred_fallthru
      _
  $region6: #{ff_module_forward.3} parent=0 // loop_footer
    %s15 = sadd.s32 1, %s11
  $region7: #{ff_module_forward.3} parent=0 // loop_footer_branch
    %10 = sbr.rel target = $region3
  $region8: #{ff_module_forward.3} parent=0 // loop_exit
    _

</llo_original>
